<compile_context>
chip_gen: v5e
topology: v5e:2x2
jax: 0.10.0
libtpu: 0.0.40
codegen_flags: <defaults>
</compile_context>

<pallas_src>
import functools

import numpy as np
import jax
import jax.numpy as jnp
from jax.experimental import pallas as pl
from jax.experimental.pallas import tpu as pltpu


_TAPS = tuple((ky, kx) for ky in (-1, 0, 1) for kx in (-1, 0, 1))  # 3x3 tap offsets


# ---------------------------------------------------------------------------
# Host-side packing helpers (run once per shape, outside the kernel)
# ---------------------------------------------------------------------------
def pack_conv3x3_weight(w_oihw):
    """(Cout, Cin, 3, 3) OIHW -> (Cout, 9*Cin); K ordered as (dy, dx, cin)."""
    cout, cin = w_oihw.shape[:2]
    return jnp.transpose(w_oihw, (0, 2, 3, 1)).reshape(cout, 9 * cin)


def conv3x3_col_masks(H, W):
    """(2, H*W) {0,1} masks killing column wrap-around for kx=-1 (row 0) / kx=+1 (row 1).

    Row (ky) out-of-bounds taps are already zero thanks to the zero-bordered shift
    scratch, so only the x-direction masks are needed.
    """
    xs = np.arange(H * W) % W
    m = np.stack([(xs >= 1), (xs <= W - 2)]).astype(np.float32)
    return jnp.asarray(m)


def _bilinear_x2_matrix_1d(n):
    """(2n, n) matrix of PyTorch bilinear x2 (align_corners=False, border clamp)."""
    a = np.zeros((2 * n, n), np.float32)
    for j in range(n):
        a[2 * j, j] += 0.75
        a[2 * j, max(j - 1, 0)] += 0.25
        a[2 * j + 1, j] += 0.75
        a[2 * j + 1, min(j + 1, n - 1)] += 0.25
    return a


def bilinear_x2_matrix(h, w):
    """(h*w, 2h*2w) matrix U such that out_flat = in_flat @ U (separable Kronecker)."""
    kron = np.kron(_bilinear_x2_matrix_1d(h), _bilinear_x2_matrix_1d(w))  # (H*W, h*w)
    return jnp.asarray(kron.T)


# ---------------------------------------------------------------------------
# Fused kernel: skip_conv + upsample-add + ResBlock, one batch element per step
# ---------------------------------------------------------------------------
def _upsample_block_kernel(*refs, H, W, has_down, mxu_dtype):
    if has_down:
        (skip_ref, up_ref, mask_ref, upmat_ref, wskip_ref, bskip_ref,
         w1_ref, b1_ref, w2_ref, b2_ref, wdown_ref, bdown_ref,
         out_ref, xsh_ref, cols_ref) = refs
    else:
        (skip_ref, up_ref, mask_ref, upmat_ref, wskip_ref, bskip_ref,
         w1_ref, b1_ref, w2_ref, b2_ref,
         out_ref, xsh_ref, cols_ref) = refs
        wdown_ref = bdown_ref = None

    S = H * W
    PAD = W + 1  # zero-border width of the shift scratch (>= max |tap shift|)
    c_max = xsh_ref.shape[0]

    # Zero only the two border strips (interior is always overwritten before use).
    # Kept per-step (not program_id-gated) so it stays correct when the parallel
    # batch axis is split across TensorCores, each owning its own scratch.
    zero_border = jnp.zeros((c_max, PAD), jnp.float32)
    xsh_ref[:, 0:PAD] = zero_border
    xsh_ref[:, PAD + S:PAD + S + PAD] = zero_border

    def matmul(a, b):
        return jnp.dot(a.astype(mxu_dtype), b.astype(mxu_dtype),
                       preferred_element_type=jnp.float32)

    def build_cols(x_flat):
        """im2col of a zero-padded 3x3 'same' conv: (Cin, S) -> Ref view (9*Cin, S)."""
        cin = x_flat.shape[0]
        xsh_ref[0:cin, PAD:PAD + S] = x_flat
        for t, (ky, kx) in enumerate(_TAPS):
            off = PAD + ky * W + kx
            tap = xsh_ref[0:cin, off:off + S]        # x shifted by (ky, kx); zero border
            if kx == -1:                             # kill column wrap-around only;
                tap = tap * mask_ref[0:1, :]         # row OOB is handled by the border
            elif kx == 1:
                tap = tap * mask_ref[1:2, :]
            cols_ref[t * cin:(t + 1) * cin, :] = tap
        return cols_ref.at[0:9 * cin, :]

    def conv(w_ref, cols, b_ref):
        return matmul(w_ref[...], cols) + b_ref[...]

    # ---- x = skip_conv(skip_f) + bilinear_x2(up_f) --------------------------------
    up_hr = matmul(up_ref[0], upmat_ref[...])                        # (up_c, S)
    x = conv(wskip_ref, build_cols(skip_ref[0])[...], bskip_ref) + up_hr

    # ---- ResBlock: r = conv2(relu(conv1(relu(x)))); x = downsample(x); out = x + r
    cols_x = build_cols(x)                                           # im2col(x), reused
    # relu(im2col(x)) == im2col(relu(x)) because the zero padding is relu-invariant.
    r = conv(w1_ref, jnp.maximum(cols_x[...], 0.0), b1_ref)          # conv1(relu(x))
    if has_down:
        x = conv(wdown_ref, cols_x[...], bdown_ref)                  # 3x3 downsample(x)
    r = conv(w2_ref, build_cols(jnp.maximum(r, 0.0))[...], b2_ref)   # conv2(relu(r))

    out_ref[0] = (x + r).astype(out_ref.dtype)


# ---------------------------------------------------------------------------
# pallas_call wrapper (NCHW in / NCHW out; only free reshapes at the boundary)
# ---------------------------------------------------------------------------
def upsample_block_forward(skip_f, up_f, params, *, has_down, mxu_dtype=jnp.float32):
    N, skip_c, H, W = skip_f.shape
    n2, up_c, h, w = up_f.shape
    assert n2 == N and (H, W) == (2 * h, 2 * w)
    out_c = params["w2"].shape[0]
    S, s_in = H * W, h * w
    c_max = max(skip_c, up_c, out_c)

    # Row-major reshapes only (no transpose): channels on sublanes, spatial on lanes.
    skip_flat = skip_f.reshape(N, skip_c, S)
    up_flat = up_f.reshape(N, up_c, s_in)

    inputs = [skip_flat, up_flat, params["col_masks"], params["upmat"],
              params["w_skip"], params["b_skip"], params["w1"], params["b1"],
              params["w2"], params["b2"]]
    in_specs = [
        pl.BlockSpec((1, skip_c, S), lambda n: (n, 0, 0)),
        pl.BlockSpec((1, up_c, s_in), lambda n: (n, 0, 0)),
        pl.BlockSpec((2, S), lambda n: (0, 0)),
        pl.BlockSpec((s_in, S), lambda n: (0, 0)),
        pl.BlockSpec((up_c, 9 * skip_c), lambda n: (0, 0)),
        pl.BlockSpec((up_c, 1), lambda n: (0, 0)),
        pl.BlockSpec((out_c, 9 * up_c), lambda n: (0, 0)),
        pl.BlockSpec((out_c, 1), lambda n: (0, 0)),
        pl.BlockSpec((out_c, 9 * out_c), lambda n: (0, 0)),
        pl.BlockSpec((out_c, 1), lambda n: (0, 0)),
    ]
    if has_down:
        inputs += [params["w_down"], params["b_down"]]
        in_specs += [pl.BlockSpec((out_c, 9 * up_c), lambda n: (0, 0)),
                     pl.BlockSpec((out_c, 1), lambda n: (0, 0))]

    kernel = functools.partial(_upsample_block_kernel, H=H, W=W,
                               has_down=has_down, mxu_dtype=mxu_dtype)
    out_flat = pl.pallas_call(
        kernel,
        out_shape=jax.ShapeDtypeStruct((N, out_c, S), skip_f.dtype),
        grid=(N,),
        in_specs=in_specs,
        out_specs=pl.BlockSpec((1, out_c, S), lambda n: (n, 0, 0)),
        scratch_shapes=[
            pltpu.VMEM((c_max, S + 2 * (W + 1)), jnp.float32),  # zero-bordered shift buffer
            pltpu.VMEM((9 * c_max, S), jnp.float32),            # im2col columns
        ],
        compiler_params=pltpu.CompilerParams(dimension_semantics=("parallel",)),
    )(*inputs)
    return out_flat.reshape(N, out_c, H, W)


# ---------------------------------------------------------------------------
# UpsampleBlock (matches the PyTorch module's forward)
# ---------------------------------------------------------------------------
class UpsampleBlockPallas:
    def __init__(self, skip_c, up_c, out_c, key, scale_factor=2, mxu_dtype=jnp.float32):
        assert scale_factor == 2, "kernel specialized for scale_factor=2"
        self.skip_c, self.up_c, self.out_c = skip_c, up_c, out_c
        self.has_down = up_c != out_c            # ResBlock downsample is a 3x3 conv, pad=1
        self.mxu_dtype = mxu_dtype
        self._param_cache = {}
        self._forward = jax.jit(functools.partial(
            upsample_block_forward, has_down=self.has_down, mxu_dtype=mxu_dtype))
        ks = jax.random.split(key, 8)

        def conv_params(kw, kb, cin, cout):
            w = 0.1 * jax.random.normal(kw, (cout, cin, 3, 3), jnp.float32)  # OIHW
            b = 0.1 * jax.random.normal(kb, (cout,), jnp.float32)
            return w, b

        self.w_skip, self.b_skip = conv_params(ks[0], ks[1], skip_c, up_c)
        self.w1, self.b1 = conv_params(ks[2], ks[3], up_c, out_c)   # ResBlock.conv1
        self.w2, self.b2 = conv_params(ks[4], ks[5], out_c, out_c)  # ResBlock.conv2
        if self.has_down:
            self.w_down, self.b_down = conv_params(ks[6], ks[7], up_c, out_c)
        else:
            self.w_down = self.b_down = None

    def _packed_params(self, H, W, h, w):
        key = (H, W, h, w)
        if key in self._param_cache:
            return self._param_cache[key]
        p = {
            "w_skip": pack_conv3x3_weight(self.w_skip), "b_skip": self.b_skip.reshape(-1, 1),
            "w1": pack_conv3x3_weight(self.w1), "b1": self.b1.reshape(-1, 1),
            "w2": pack_conv3x3_weight(self.w2), "b2": self.b2.reshape(-1, 1),
            "col_masks": conv3x3_col_masks(H, W),
            "upmat": bilinear_x2_matrix(h, w),
        }
        if self.has_down:
            p["w_down"] = pack_conv3x3_weight(self.w_down)
            p["b_down"] = self.b_down.reshape(-1, 1)
        self._param_cache[key] = p
        return p

    def __call__(self, skip_f_nchw, up_f_nchw):
        _, _, H, W = skip_f_nchw.shape
        _, _, h, w = up_f_nchw.shape
        params = self._packed_params(H, W, h, w)
        return self._forward(skip_f_nchw, up_f_nchw, params)

    # Pure-JAX reference (same math as the PyTorch module) for self-checking.
    def reference(self, skip_f, up_f):
        hp = jax.lax.Precision.HIGHEST

        def conv(x, wgt, b):
            y = jax.lax.conv_general_dilated(
                x, wgt, (1, 1), "SAME",
                dimension_numbers=("NCHW", "OIHW", "NCHW"), precision=hp)
            return y + b[None, :, None, None]

        _, _, h, w = up_f.shape
        a_h = jnp.asarray(_bilinear_x2_matrix_1d(h))
        a_w = jnp.asarray(_bilinear_x2_matrix_1d(w))
        up_hr = jnp.einsum("Yy,ncyx,Xx->ncYX", a_h, up_f, a_w, precision=hp)
        x = conv(skip_f, self.w_skip, self.b_skip) + up_hr
        r = conv(jax.nn.relu(x), self.w1, self.b1)
        r = conv(jax.nn.relu(r), self.w2, self.b2)
        if self.has_down:
            x = conv(x, self.w_down, self.b_down)
        return x + r


if __name__ == "__main__":
    key = jax.random.PRNGKey(0)
    k_params, k_skip, k_up = jax.random.split(key, 3)

    N, skip_c, up_c, out_c = 2, 4, 8, 16
    H, W = 16, 16

    block = UpsampleBlockPallas(skip_c, up_c, out_c, key=k_params)

    skip_f = jax.random.normal(k_skip, (N, skip_c, H, W), jnp.float32)
    up_f = jax.random.normal(k_up, (N, up_c, H // 2, W // 2), jnp.float32)

    out = jax.block_until_ready(block(skip_f, up_f))

    assert out.shape == (N, out_c, H, W), out.shape
    assert bool(jnp.all(jnp.isfinite(out)))

    ref = jax.block_until_ready(block.reference(skip_f, up_f))
    max_err = float(jnp.max(jnp.abs(out - ref)))
    assert max_err < 5e-2, f"mismatch vs reference: max abs err = {max_err}"

    print("KERNEL_OK")
</pallas_src>

<mosaic_0001>
module attributes {stable_mosaic.version = 11 : i64} {
  func.func @_upsample_block_kernel(%arg0: i32, %arg1: memref<1x4x256xf32, #tpu.memory_space<vmem>>, %arg2: memref<1x8x64xf32, #tpu.memory_space<vmem>>, %arg3: memref<2x256xf32, #tpu.memory_space<vmem>>, %arg4: memref<64x256xf32, #tpu.memory_space<vmem>>, %arg5: memref<8x36xf32, #tpu.memory_space<vmem>>, %arg6: memref<8x1xf32, #tpu.memory_space<vmem>>, %arg7: memref<16x72xf32, #tpu.memory_space<vmem>>, %arg8: memref<16x1xf32, #tpu.memory_space<vmem>>, %arg9: memref<16x144xf32, #tpu.memory_space<vmem>>, %arg10: memref<16x1xf32, #tpu.memory_space<vmem>>, %arg11: memref<16x72xf32, #tpu.memory_space<vmem>>, %arg12: memref<16x1xf32, #tpu.memory_space<vmem>>, %arg13: memref<1x16x256xf32, #tpu.memory_space<vmem>>, %arg14: memref<16x290xf32, #tpu.memory_space<vmem>>, %arg15: memref<144x256xf32, #tpu.memory_space<vmem>>) attributes {dimension_semantics = [#tpu.dimension_semantics<parallel>], iteration_bounds = array<i64: 2>, scalar_prefetch = 0 : i64, scratch_operands = 2 : i64, tpu.core_type = #tpu.core_type<tc>, window_params = [{transform_indices = @transform_0, window_bounds = array<i64: 1, 4, 256>}, {transform_indices = @transform_1, window_bounds = array<i64: 1, 8, 64>}, {pipeline_mode = #tpu.pipeline_mode<synchronous>, transform_indices = @transform_2, window_bounds = array<i64: 2, 256>}, {pipeline_mode = #tpu.pipeline_mode<synchronous>, transform_indices = @transform_3, window_bounds = array<i64: 64, 256>}, {pipeline_mode = #tpu.pipeline_mode<synchronous>, transform_indices = @transform_4, window_bounds = array<i64: 8, 36>}, {pipeline_mode = #tpu.pipeline_mode<synchronous>, transform_indices = @transform_5, window_bounds = array<i64: 8, 1>}, {pipeline_mode = #tpu.pipeline_mode<synchronous>, transform_indices = @transform_6, window_bounds = array<i64: 16, 72>}, {pipeline_mode = #tpu.pipeline_mode<synchronous>, transform_indices = @transform_7, window_bounds = array<i64: 16, 1>}, {pipeline_mode = #tpu.pipeline_mode<synchronous>, transform_indices = @transform_8, window_bounds = array<i64: 16, 144>}, {pipeline_mode = #tpu.pipeline_mode<synchronous>, transform_indices = @transform_9, window_bounds = array<i64: 16, 1>}, {pipeline_mode = #tpu.pipeline_mode<synchronous>, transform_indices = @transform_10, window_bounds = array<i64: 16, 72>}, {pipeline_mode = #tpu.pipeline_mode<synchronous>, transform_indices = @transform_11, window_bounds = array<i64: 16, 1>}, {transform_indices = @transform_12, window_bounds = array<i64: 1, 16, 256>}]} {
    %cst = arith.constant 0.000000e+00 : f32
    %0 = vector.broadcast %cst : f32 to vector<16x17xf32>
    %c0 = arith.constant 0 : index
    %c0_0 = arith.constant 0 : index
    %1 = vector.load %arg14[%c0, %c0_0] : memref<16x290xf32, #tpu.memory_space<vmem>>, vector<16x17xf32>
    tpu.vector_store %arg14[%c0, %c0_0], %0 {strides = array<i32>} : memref<16x290xf32, #tpu.memory_space<vmem>>, vector<16x17xf32>,
    %c0_1 = arith.constant 0 : index
    %c273 = arith.constant 273 : index
    %2 = vector.load %arg14[%c0_1, %c273] : memref<16x290xf32, #tpu.memory_space<vmem>>, vector<16x17xf32>
    tpu.vector_store %arg14[%c0_1, %c273], %0 {strides = array<i32>} : memref<16x290xf32, #tpu.memory_space<vmem>>, vector<16x17xf32>,
    %c0_2 = arith.constant 0 : index
    %c0_3 = arith.constant 0 : index
    %c0_4 = arith.constant 0 : index
    %3 = vector.load %arg2[%c0_2, %c0_3, %c0_4] : memref<1x8x64xf32, #tpu.memory_space<vmem>>, vector<1x8x64xf32>
    %4 = vector.shape_cast %3 : vector<1x8x64xf32> to vector<8x64xf32>
    %c0_5 = arith.constant 0 : index
    %c0_6 = arith.constant 0 : index
    %5 = vector.load %arg4[%c0_5, %c0_6] : memref<64x256xf32, #tpu.memory_space<vmem>>, vector<64x256xf32>
    %cst_7 = arith.constant dense<0.000000e+00> : vector<8x256xf32>
    %6 = tpu.matmul %4, %5, %cst_7 {dimension_numbers = #tpu.dot_dimension_numbers<[1], [0], [0], [1], [0, 0, 1, 1], [], []>} : vector<8x64xf32>, vector<64x256xf32>, vector<8x256xf32> -> vector<8x256xf32>
    %c0_8 = arith.constant 0 : index
    %c0_9 = arith.constant 0 : index
    %c0_10 = arith.constant 0 : index
    %7 = vector.load %arg1[%c0_8, %c0_9, %c0_10] : memref<1x4x256xf32, #tpu.memory_space<vmem>>, vector<1x4x256xf32>
    %8 = vector.shape_cast %7 : vector<1x4x256xf32> to vector<4x256xf32>
    %c0_11 = arith.constant 0 : index
    %c17 = arith.constant 17 : index
    %9 = vector.load %arg14[%c0_11, %c17] : memref<16x290xf32, #tpu.memory_space<vmem>>, vector<4x256xf32>
    tpu.vector_store %arg14[%c0_11, %c17], %8 {strides = array<i32>} : memref<16x290xf32, #tpu.memory_space<vmem>>, vector<4x256xf32>,
    %c0_12 = arith.constant 0 : index
    %c0_13 = arith.constant 0 : index
    %10 = vector.load %arg14[%c0_12, %c0_13] : memref<16x290xf32, #tpu.memory_space<vmem>>, vector<4x256xf32>
    %c0_14 = arith.constant 0 : index
    %c0_15 = arith.constant 0 : index
    %11 = vector.load %arg3[%c0_14, %c0_15] : memref<2x256xf32, #tpu.memory_space<vmem>>, vector<1x256xf32>
    %12 = vector.broadcast %11 : vector<1x256xf32> to vector<4x256xf32>
    %13 = arith.mulf %10, %12 : vector<4x256xf32>
    %c0_16 = arith.constant 0 : index
    %c0_17 = arith.constant 0 : index
    %14 = vector.load %arg15[%c0_16, %c0_17] : memref<144x256xf32, #tpu.memory_space<vmem>>, vector<4x256xf32>
    tpu.vector_store %arg15[%c0_16, %c0_17], %13 {strides = array<i32>} : memref<144x256xf32, #tpu.memory_space<vmem>>, vector<4x256xf32>,
    %c0_18 = arith.constant 0 : index
    %c1 = arith.constant 1 : index
    %15 = vector.load %arg14[%c0_18, %c1] : memref<16x290xf32, #tpu.memory_space<vmem>>, vector<4x256xf32>
    %c4 = arith.constant 4 : index
    %c0_19 = arith.constant 0 : index
    %16 = vector.load %arg15[%c4, %c0_19] : memref<144x256xf32, #tpu.memory_space<vmem>>, vector<4x256xf32>
    tpu.vector_store %arg15[%c4, %c0_19], %15 {strides = array<i32>} : memref<144x256xf32, #tpu.memory_space<vmem>>, vector<4x256xf32>,
    %c0_20 = arith.constant 0 : index
    %c2 = arith.constant 2 : index
    %17 = vector.load %arg14[%c0_20, %c2] : memref<16x290xf32, #tpu.memory_space<vmem>>, vector<4x256xf32>
    %c1_21 = arith.constant 1 : index
    %c0_22 = arith.constant 0 : index
    %18 = vector.load %arg3[%c1_21, %c0_22] : memref<2x256xf32, #tpu.memory_space<vmem>>, vector<1x256xf32>
    %19 = vector.broadcast %18 : vector<1x256xf32> to vector<4x256xf32>
    %20 = arith.mulf %17, %19 : vector<4x256xf32>
    %c8 = arith.constant 8 : index
    %c0_23 = arith.constant 0 : index
    %21 = vector.load %arg15[%c8, %c0_23] : memref<144x256xf32, #tpu.memory_space<vmem>>, vector<4x256xf32>
    tpu.vector_store %arg15[%c8, %c0_23], %20 {strides = array<i32>} : memref<144x256xf32, #tpu.memory_space<vmem>>, vector<4x256xf32>,
    %c0_24 = arith.constant 0 : index
    %c16 = arith.constant 16 : index
    %22 = vector.load %arg14[%c0_24, %c16] : memref<16x290xf32, #tpu.memory_space<vmem>>, vector<4x256xf32>
    %c0_25 = arith.constant 0 : index
    %c0_26 = arith.constant 0 : index
    %23 = vector.load %arg3[%c0_25, %c0_26] : memref<2x256xf32, #tpu.memory_space<vmem>>, vector<1x256xf32>
    %24 = vector.broadcast %23 : vector<1x256xf32> to vector<4x256xf32>
    %25 = arith.mulf %22, %24 : vector<4x256xf32>
    %c12 = arith.constant 12 : index
    %c0_27 = arith.constant 0 : index
    %26 = vector.load %arg15[%c12, %c0_27] : memref<144x256xf32, #tpu.memory_space<vmem>>, vector<4x256xf32>
    tpu.vector_store %arg15[%c12, %c0_27], %25 {strides = array<i32>} : memref<144x256xf32, #tpu.memory_space<vmem>>, vector<4x256xf32>,
    %c0_28 = arith.constant 0 : index
    %c17_29 = arith.constant 17 : index
    %27 = vector.load %arg14[%c0_28, %c17_29] : memref<16x290xf32, #tpu.memory_space<vmem>>, vector<4x256xf32>
    %c16_30 = arith.constant 16 : index
    %c0_31 = arith.constant 0 : index
    %28 = vector.load %arg15[%c16_30, %c0_31] : memref<144x256xf32, #tpu.memory_space<vmem>>, vector<4x256xf32>
    tpu.vector_store %arg15[%c16_30, %c0_31], %27 {strides = array<i32>} : memref<144x256xf32, #tpu.memory_space<vmem>>, vector<4x256xf32>,
    %c0_32 = arith.constant 0 : index
    %c18 = arith.constant 18 : index
    %29 = vector.load %arg14[%c0_32, %c18] : memref<16x290xf32, #tpu.memory_space<vmem>>, vector<4x256xf32>
    %c1_33 = arith.constant 1 : index
    %c0_34 = arith.constant 0 : index
    %30 = vector.load %arg3[%c1_33, %c0_34] : memref<2x256xf32, #tpu.memory_space<vmem>>, vector<1x256xf32>
    %31 = vector.broadcast %30 : vector<1x256xf32> to vector<4x256xf32>
    %32 = arith.mulf %29, %31 : vector<4x256xf32>
    %c20 = arith.constant 20 : index
    %c0_35 = arith.constant 0 : index
    %33 = vector.load %arg15[%c20, %c0_35] : memref<144x256xf32, #tpu.memory_space<vmem>>, vector<4x256xf32>
    tpu.vector_store %arg15[%c20, %c0_35], %32 {strides = array<i32>} : memref<144x256xf32, #tpu.memory_space<vmem>>, vector<4x256xf32>,
    %c0_36 = arith.constant 0 : index
    %c32 = arith.constant 32 : index
    %34 = vector.load %arg14[%c0_36, %c32] : memref<16x290xf32, #tpu.memory_space<vmem>>, vector<4x256xf32>
    %c0_37 = arith.constant 0 : index
    %c0_38 = arith.constant 0 : index
    %35 = vector.load %arg3[%c0_37, %c0_38] : memref<2x256xf32, #tpu.memory_space<vmem>>, vector<1x256xf32>
    %36 = vector.broadcast %35 : vector<1x256xf32> to vector<4x256xf32>
    %37 = arith.mulf %34, %36 : vector<4x256xf32>
    %c24 = arith.constant 24 : index
    %c0_39 = arith.constant 0 : index
    %38 = vector.load %arg15[%c24, %c0_39] : memref<144x256xf32, #tpu.memory_space<vmem>>, vector<4x256xf32>
    tpu.vector_store %arg15[%c24, %c0_39], %37 {strides = array<i32>} : memref<144x256xf32, #tpu.memory_space<vmem>>, vector<4x256xf32>,
    %c0_40 = arith.constant 0 : index
    %c33 = arith.constant 33 : index
    %39 = vector.load %arg14[%c0_40, %c33] : memref<16x290xf32, #tpu.memory_space<vmem>>, vector<4x256xf32>
    %c28 = arith.constant 28 : index
    %c0_41 = arith.constant 0 : index
    %40 = vector.load %arg15[%c28, %c0_41] : memref<144x256xf32, #tpu.memory_space<vmem>>, vector<4x256xf32>
    tpu.vector_store %arg15[%c28, %c0_41], %39 {strides = array<i32>} : memref<144x256xf32, #tpu.memory_space<vmem>>, vector<4x256xf32>,
    %c0_42 = arith.constant 0 : index
    %c34 = arith.constant 34 : index
    %41 = vector.load %arg14[%c0_42, %c34] : memref<16x290xf32, #tpu.memory_space<vmem>>, vector<4x256xf32>
    %c1_43 = arith.constant 1 : index
    %c0_44 = arith.constant 0 : index
    %42 = vector.load %arg3[%c1_43, %c0_44] : memref<2x256xf32, #tpu.memory_space<vmem>>, vector<1x256xf32>
    %43 = vector.broadcast %42 : vector<1x256xf32> to vector<4x256xf32>
    %44 = arith.mulf %41, %43 : vector<4x256xf32>
    %c32_45 = arith.constant 32 : index
    %c0_46 = arith.constant 0 : index
    %45 = vector.load %arg15[%c32_45, %c0_46] : memref<144x256xf32, #tpu.memory_space<vmem>>, vector<4x256xf32>
    tpu.vector_store %arg15[%c32_45, %c0_46], %44 {strides = array<i32>} : memref<144x256xf32, #tpu.memory_space<vmem>>, vector<4x256xf32>,
    %c0_47 = arith.constant 0 : index
    %c0_48 = arith.constant 0 : index
    %46 = vector.load %arg15[%c0_47, %c0_48] : memref<144x256xf32, #tpu.memory_space<vmem>>, vector<36x256xf32>
    %c0_49 = arith.constant 0 : index
    %c0_50 = arith.constant 0 : index
    %47 = vector.load %arg5[%c0_49, %c0_50] : memref<8x36xf32, #tpu.memory_space<vmem>>, vector<8x36xf32>
    %cst_51 = arith.constant dense<0.000000e+00> : vector<8x256xf32>
    %48 = tpu.matmul %47, %46, %cst_51 {dimension_numbers = #tpu.dot_dimension_numbers<[1], [0], [0], [1], [0, 0, 1, 1], [], []>} : vector<8x36xf32>, vector<36x256xf32>, vector<8x256xf32> -> vector<8x256xf32>
    %c0_52 = arith.constant 0 : index
    %c0_53 = arith.constant 0 : index
    %49 = vector.load %arg6[%c0_52, %c0_53] : memref<8x1xf32, #tpu.memory_space<vmem>>, vector<8x1xf32>
    %50 = vector.broadcast %49 : vector<8x1xf32> to vector<8x256xf32>
    %51 = arith.addf %48, %50 : vector<8x256xf32>
    %52 = arith.addf %51, %6 : vector<8x256xf32>
    %c0_54 = arith.constant 0 : index
    %c17_55 = arith.constant 17 : index
    %53 = vector.load %arg14[%c0_54, %c17_55] : memref<16x290xf32, #tpu.memory_space<vmem>>, vector<8x256xf32>
    tpu.vector_store %arg14[%c0_54, %c17_55], %52 {strides = array<i32>} : memref<16x290xf32, #tpu.memory_space<vmem>>, vector<8x256xf32>,
    %c0_56 = arith.constant 0 : index
    %c0_57 = arith.constant 0 : index
    %54 = vector.load %arg14[%c0_56, %c0_57] : memref<16x290xf32, #tpu.memory_space<vmem>>, vector<8x256xf32>
    %c0_58 = arith.constant 0 : index
    %c0_59 = arith.constant 0 : index
    %55 = vector.load %arg3[%c0_58, %c0_59] : memref<2x256xf32, #tpu.memory_space<vmem>>, vector<1x256xf32>
    %56 = vector.broadcast %55 : vector<1x256xf32> to vector<8x256xf32>
    %57 = arith.mulf %54, %56 : vector<8x256xf32>
    %c0_60 = arith.constant 0 : index
    %c0_61 = arith.constant 0 : index
    %58 = vector.load %arg15[%c0_60, %c0_61] : memref<144x256xf32, #tpu.memory_space<vmem>>, vector<8x256xf32>
    tpu.vector_store %arg15[%c0_60, %c0_61], %57 {strides = array<i32>} : memref<144x256xf32, #tpu.memory_space<vmem>>, vector<8x256xf32>,
    %c0_62 = arith.constant 0 : index
    %c1_63 = arith.constant 1 : index
    %59 = vector.load %arg14[%c0_62, %c1_63] : memref<16x290xf32, #tpu.memory_space<vmem>>, vector<8x256xf32>
    %c8_64 = arith.constant 8 : index
    %c0_65 = arith.constant 0 : index
    %60 = vector.load %arg15[%c8_64, %c0_65] : memref<144x256xf32, #tpu.memory_space<vmem>>, vector<8x256xf32>
    tpu.vector_store %arg15[%c8_64, %c0_65], %59 {strides = array<i32>} : memref<144x256xf32, #tpu.memory_space<vmem>>, vector<8x256xf32>,
    %c0_66 = arith.constant 0 : index
    %c2_67 = arith.constant 2 : index
    %61 = vector.load %arg14[%c0_66, %c2_67] : memref<16x290xf32, #tpu.memory_space<vmem>>, vector<8x256xf32>
    %c1_68 = arith.constant 1 : index
    %c0_69 = arith.constant 0 : index
    %62 = vector.load %arg3[%c1_68, %c0_69] : memref<2x256xf32, #tpu.memory_space<vmem>>, vector<1x256xf32>
    %63 = vector.broadcast %62 : vector<1x256xf32> to vector<8x256xf32>
    %64 = arith.mulf %61, %63 : vector<8x256xf32>
    %c16_70 = arith.constant 16 : index
    %c0_71 = arith.constant 0 : index
    %65 = vector.load %arg15[%c16_70, %c0_71] : memref<144x256xf32, #tpu.memory_space<vmem>>, vector<8x256xf32>
    tpu.vector_store %arg15[%c16_70, %c0_71], %64 {strides = array<i32>} : memref<144x256xf32, #tpu.memory_space<vmem>>, vector<8x256xf32>,
    %c0_72 = arith.constant 0 : index
    %c16_73 = arith.constant 16 : index
    %66 = vector.load %arg14[%c0_72, %c16_73] : memref<16x290xf32, #tpu.memory_space<vmem>>, vector<8x256xf32>
    %c0_74 = arith.constant 0 : index
    %c0_75 = arith.constant 0 : index
    %67 = vector.load %arg3[%c0_74, %c0_75] : memref<2x256xf32, #tpu.memory_space<vmem>>, vector<1x256xf32>
    %68 = vector.broadcast %67 : vector<1x256xf32> to vector<8x256xf32>
    %69 = arith.mulf %66, %68 : vector<8x256xf32>
    %c24_76 = arith.constant 24 : index
    %c0_77 = arith.constant 0 : index
    %70 = vector.load %arg15[%c24_76, %c0_77] : memref<144x256xf32, #tpu.memory_space<vmem>>, vector<8x256xf32>
    tpu.vector_store %arg15[%c24_76, %c0_77], %69 {strides = array<i32>} : memref<144x256xf32, #tpu.memory_space<vmem>>, vector<8x256xf32>,
    %c0_78 = arith.constant 0 : index
    %c17_79 = arith.constant 17 : index
    %71 = vector.load %arg14[%c0_78, %c17_79] : memref<16x290xf32, #tpu.memory_space<vmem>>, vector<8x256xf32>
    %c32_80 = arith.constant 32 : index
    %c0_81 = arith.constant 0 : index
    %72 = vector.load %arg15[%c32_80, %c0_81] : memref<144x256xf32, #tpu.memory_space<vmem>>, vector<8x256xf32>
    tpu.vector_store %arg15[%c32_80, %c0_81], %71 {strides = array<i32>} : memref<144x256xf32, #tpu.memory_space<vmem>>, vector<8x256xf32>,
    %c0_82 = arith.constant 0 : index
    %c18_83 = arith.constant 18 : index
    %73 = vector.load %arg14[%c0_82, %c18_83] : memref<16x290xf32, #tpu.memory_space<vmem>>, vector<8x256xf32>
    %c1_84 = arith.constant 1 : index
    %c0_85 = arith.constant 0 : index
    %74 = vector.load %arg3[%c1_84, %c0_85] : memref<2x256xf32, #tpu.memory_space<vmem>>, vector<1x256xf32>
    %75 = vector.broadcast %74 : vector<1x256xf32> to vector<8x256xf32>
    %76 = arith.mulf %73, %75 : vector<8x256xf32>
    %c40 = arith.constant 40 : index
    %c0_86 = arith.constant 0 : index
    %77 = vector.load %arg15[%c40, %c0_86] : memref<144x256xf32, #tpu.memory_space<vmem>>, vector<8x256xf32>
    tpu.vector_store %arg15[%c40, %c0_86], %76 {strides = array<i32>} : memref<144x256xf32, #tpu.memory_space<vmem>>, vector<8x256xf32>,
    %c0_87 = arith.constant 0 : index
    %c32_88 = arith.constant 32 : index
    %78 = vector.load %arg14[%c0_87, %c32_88] : memref<16x290xf32, #tpu.memory_space<vmem>>, vector<8x256xf32>
    %c0_89 = arith.constant 0 : index
    %c0_90 = arith.constant 0 : index
    %79 = vector.load %arg3[%c0_89, %c0_90] : memref<2x256xf32, #tpu.memory_space<vmem>>, vector<1x256xf32>
    %80 = vector.broadcast %79 : vector<1x256xf32> to vector<8x256xf32>
    %81 = arith.mulf %78, %80 : vector<8x256xf32>
    %c48 = arith.constant 48 : index
    %c0_91 = arith.constant 0 : index
    %82 = vector.load %arg15[%c48, %c0_91] : memref<144x256xf32, #tpu.memory_space<vmem>>, vector<8x256xf32>
    tpu.vector_store %arg15[%c48, %c0_91], %81 {strides = array<i32>} : memref<144x256xf32, #tpu.memory_space<vmem>>, vector<8x256xf32>,
    %c0_92 = arith.constant 0 : index
    %c33_93 = arith.constant 33 : index
    %83 = vector.load %arg14[%c0_92, %c33_93] : memref<16x290xf32, #tpu.memory_space<vmem>>, vector<8x256xf32>
    %c56 = arith.constant 56 : index
    %c0_94 = arith.constant 0 : index
    %84 = vector.load %arg15[%c56, %c0_94] : memref<144x256xf32, #tpu.memory_space<vmem>>, vector<8x256xf32>
    tpu.vector_store %arg15[%c56, %c0_94], %83 {strides = array<i32>} : memref<144x256xf32, #tpu.memory_space<vmem>>, vector<8x256xf32>,
    %c0_95 = arith.constant 0 : index
    %c34_96 = arith.constant 34 : index
    %85 = vector.load %arg14[%c0_95, %c34_96] : memref<16x290xf32, #tpu.memory_space<vmem>>, vector<8x256xf32>
    %c1_97 = arith.constant 1 : index
    %c0_98 = arith.constant 0 : index
    %86 = vector.load %arg3[%c1_97, %c0_98] : memref<2x256xf32, #tpu.memory_space<vmem>>, vector<1x256xf32>
    %87 = vector.broadcast %86 : vector<1x256xf32> to vector<8x256xf32>
    %88 = arith.mulf %85, %87 : vector<8x256xf32>
    %c64 = arith.constant 64 : index
    %c0_99 = arith.constant 0 : index
    %89 = vector.load %arg15[%c64, %c0_99] : memref<144x256xf32, #tpu.memory_space<vmem>>, vector<8x256xf32>
    tpu.vector_store %arg15[%c64, %c0_99], %88 {strides = array<i32>} : memref<144x256xf32, #tpu.memory_space<vmem>>, vector<8x256xf32>,
    %c0_100 = arith.constant 0 : index
    %c0_101 = arith.constant 0 : index
    %90 = vector.load %arg15[%c0_100, %c0_101] : memref<144x256xf32, #tpu.memory_space<vmem>>, vector<72x256xf32>
    %cst_102 = arith.constant 0.000000e+00 : f32
    %91 = vector.broadcast %cst_102 : f32 to vector<72x256xf32>
    %92 = arith.maximumf %90, %91 : vector<72x256xf32>
    %c0_103 = arith.constant 0 : index
    %c0_104 = arith.constant 0 : index
    %93 = vector.load %arg7[%c0_103, %c0_104] : memref<16x72xf32, #tpu.memory_space<vmem>>, vector<16x72xf32>
    %cst_105 = arith.constant dense<0.000000e+00> : vector<16x256xf32>
    %94 = tpu.matmul %93, %92, %cst_105 {dimension_numbers = #tpu.dot_dimension_numbers<[1], [0], [0], [1], [0, 0, 1, 1], [], []>} : vector<16x72xf32>, vector<72x256xf32>, vector<16x256xf32> -> vector<16x256xf32>
    %c0_106 = arith.constant 0 : index
    %c0_107 = arith.constant 0 : index
    %95 = vector.load %arg8[%c0_106, %c0_107] : memref<16x1xf32, #tpu.memory_space<vmem>>, vector<16x1xf32>
    %96 = vector.broadcast %95 : vector<16x1xf32> to vector<16x256xf32>
    %97 = arith.addf %94, %96 : vector<16x256xf32>
    %c0_108 = arith.constant 0 : index
    %c0_109 = arith.constant 0 : index
    %98 = vector.load %arg15[%c0_108, %c0_109] : memref<144x256xf32, #tpu.memory_space<vmem>>, vector<72x256xf32>
    %c0_110 = arith.constant 0 : index
    %c0_111 = arith.constant 0 : index
    %99 = vector.load %arg11[%c0_110, %c0_111] : memref<16x72xf32, #tpu.memory_space<vmem>>, vector<16x72xf32>
    %cst_112 = arith.constant dense<0.000000e+00> : vector<16x256xf32>
    %100 = tpu.matmul %99, %98, %cst_112 {dimension_numbers = #tpu.dot_dimension_numbers<[1], [0], [0], [1], [0, 0, 1, 1], [], []>} : vector<16x72xf32>, vector<72x256xf32>, vector<16x256xf32> -> vector<16x256xf32>
    %c0_113 = arith.constant 0 : index
    %c0_114 = arith.constant 0 : index
    %101 = vector.load %arg12[%c0_113, %c0_114] : memref<16x1xf32, #tpu.memory_space<vmem>>, vector<16x1xf32>
    %102 = vector.broadcast %101 : vector<16x1xf32> to vector<16x256xf32>
    %103 = arith.addf %100, %102 : vector<16x256xf32>
    %cst_115 = arith.constant 0.000000e+00 : f32
    %104 = vector.broadcast %cst_115 : f32 to vector<16x256xf32>
    %105 = arith.maximumf %97, %104 : vector<16x256xf32>
    %c0_116 = arith.constant 0 : index
    %c17_117 = arith.constant 17 : index
    %106 = vector.load %arg14[%c0_116, %c17_117] : memref<16x290xf32, #tpu.memory_space<vmem>>, vector<16x256xf32>
    tpu.vector_store %arg14[%c0_116, %c17_117], %105 {strides = array<i32>} : memref<16x290xf32, #tpu.memory_space<vmem>>, vector<16x256xf32>,
    %c0_118 = arith.constant 0 : index
    %c0_119 = arith.constant 0 : index
    %107 = vector.load %arg14[%c0_118, %c0_119] : memref<16x290xf32, #tpu.memory_space<vmem>>, vector<16x256xf32>
    %c0_120 = arith.constant 0 : index
    %c0_121 = arith.constant 0 : index
    %108 = vector.load %arg3[%c0_120, %c0_121] : memref<2x256xf32, #tpu.memory_space<vmem>>, vector<1x256xf32>
    %109 = vector.broadcast %108 : vector<1x256xf32> to vector<16x256xf32>
    %110 = arith.mulf %107, %109 : vector<16x256xf32>
    %c0_122 = arith.constant 0 : index
    %c0_123 = arith.constant 0 : index
    %111 = vector.load %arg15[%c0_122, %c0_123] : memref<144x256xf32, #tpu.memory_space<vmem>>, vector<16x256xf32>
    tpu.vector_store %arg15[%c0_122, %c0_123], %110 {strides = array<i32>} : memref<144x256xf32, #tpu.memory_space<vmem>>, vector<16x256xf32>,
    %c0_124 = arith.constant 0 : index
    %c1_125 = arith.constant 1 : index
    %112 = vector.load %arg14[%c0_124, %c1_125] : memref<16x290xf32, #tpu.memory_space<vmem>>, vector<16x256xf32>
    %c16_126 = arith.constant 16 : index
    %c0_127 = arith.constant 0 : index
    %113 = vector.load %arg15[%c16_126, %c0_127] : memref<144x256xf32, #tpu.memory_space<vmem>>, vector<16x256xf32>
    tpu.vector_store %arg15[%c16_126, %c0_127], %112 {strides = array<i32>} : memref<144x256xf32, #tpu.memory_space<vmem>>, vector<16x256xf32>,
    %c0_128 = arith.constant 0 : index
    %c2_129 = arith.constant 2 : index
    %114 = vector.load %arg14[%c0_128, %c2_129] : memref<16x290xf32, #tpu.memory_space<vmem>>, vector<16x256xf32>
    %c1_130 = arith.constant 1 : index
    %c0_131 = arith.constant 0 : index
    %115 = vector.load %arg3[%c1_130, %c0_131] : memref<2x256xf32, #tpu.memory_space<vmem>>, vector<1x256xf32>
    %116 = vector.broadcast %115 : vector<1x256xf32> to vector<16x256xf32>
    %117 = arith.mulf %114, %116 : vector<16x256xf32>
    %c32_132 = arith.constant 32 : index
    %c0_133 = arith.constant 0 : index
    %118 = vector.load %arg15[%c32_132, %c0_133] : memref<144x256xf32, #tpu.memory_space<vmem>>, vector<16x256xf32>
    tpu.vector_store %arg15[%c32_132, %c0_133], %117 {strides = array<i32>} : memref<144x256xf32, #tpu.memory_space<vmem>>, vector<16x256xf32>,
    %c0_134 = arith.constant 0 : index
    %c16_135 = arith.constant 16 : index
    %119 = vector.load %arg14[%c0_134, %c16_135] : memref<16x290xf32, #tpu.memory_space<vmem>>, vector<16x256xf32>
    %c0_136 = arith.constant 0 : index
    %c0_137 = arith.constant 0 : index
    %120 = vector.load %arg3[%c0_136, %c0_137] : memref<2x256xf32, #tpu.memory_space<vmem>>, vector<1x256xf32>
    %121 = vector.broadcast %120 : vector<1x256xf32> to vector<16x256xf32>
    %122 = arith.mulf %119, %121 : vector<16x256xf32>
    %c48_138 = arith.constant 48 : index
    %c0_139 = arith.constant 0 : index
    %123 = vector.load %arg15[%c48_138, %c0_139] : memref<144x256xf32, #tpu.memory_space<vmem>>, vector<16x256xf32>
    tpu.vector_store %arg15[%c48_138, %c0_139], %122 {strides = array<i32>} : memref<144x256xf32, #tpu.memory_space<vmem>>, vector<16x256xf32>,
    %c0_140 = arith.constant 0 : index
    %c17_141 = arith.constant 17 : index
    %124 = vector.load %arg14[%c0_140, %c17_141] : memref<16x290xf32, #tpu.memory_space<vmem>>, vector<16x256xf32>
    %c64_142 = arith.constant 64 : index
    %c0_143 = arith.constant 0 : index
    %125 = vector.load %arg15[%c64_142, %c0_143] : memref<144x256xf32, #tpu.memory_space<vmem>>, vector<16x256xf32>
    tpu.vector_store %arg15[%c64_142, %c0_143], %124 {strides = array<i32>} : memref<144x256xf32, #tpu.memory_space<vmem>>, vector<16x256xf32>,
    %c0_144 = arith.constant 0 : index
    %c18_145 = arith.constant 18 : index
    %126 = vector.load %arg14[%c0_144, %c18_145] : memref<16x290xf32, #tpu.memory_space<vmem>>, vector<16x256xf32>
    %c1_146 = arith.constant 1 : index
    %c0_147 = arith.constant 0 : index
    %127 = vector.load %arg3[%c1_146, %c0_147] : memref<2x256xf32, #tpu.memory_space<vmem>>, vector<1x256xf32>
    %128 = vector.broadcast %127 : vector<1x256xf32> to vector<16x256xf32>
    %129 = arith.mulf %126, %128 : vector<16x256xf32>
    %c80 = arith.constant 80 : index
    %c0_148 = arith.constant 0 : index
    %130 = vector.load %arg15[%c80, %c0_148] : memref<144x256xf32, #tpu.memory_space<vmem>>, vector<16x256xf32>
    tpu.vector_store %arg15[%c80, %c0_148], %129 {strides = array<i32>} : memref<144x256xf32, #tpu.memory_space<vmem>>, vector<16x256xf32>,
    %c0_149 = arith.constant 0 : index
    %c32_150 = arith.constant 32 : index
    %131 = vector.load %arg14[%c0_149, %c32_150] : memref<16x290xf32, #tpu.memory_space<vmem>>, vector<16x256xf32>
    %c0_151 = arith.constant 0 : index
    %c0_152 = arith.constant 0 : index
    %132 = vector.load %arg3[%c0_151, %c0_152] : memref<2x256xf32, #tpu.memory_space<vmem>>, vector<1x256xf32>
    %133 = vector.broadcast %132 : vector<1x256xf32> to vector<16x256xf32>
    %134 = arith.mulf %131, %133 : vector<16x256xf32>
    %c96 = arith.constant 96 : index
    %c0_153 = arith.constant 0 : index
    %135 = vector.load %arg15[%c96, %c0_153] : memref<144x256xf32, #tpu.memory_space<vmem>>, vector<16x256xf32>
    tpu.vector_store %arg15[%c96, %c0_153], %134 {strides = array<i32>} : memref<144x256xf32, #tpu.memory_space<vmem>>, vector<16x256xf32>,
    %c0_154 = arith.constant 0 : index
    %c33_155 = arith.constant 33 : index
    %136 = vector.load %arg14[%c0_154, %c33_155] : memref<16x290xf32, #tpu.memory_space<vmem>>, vector<16x256xf32>
    %c112 = arith.constant 112 : index
    %c0_156 = arith.constant 0 : index
    %137 = vector.load %arg15[%c112, %c0_156] : memref<144x256xf32, #tpu.memory_space<vmem>>, vector<16x256xf32>
    tpu.vector_store %arg15[%c112, %c0_156], %136 {strides = array<i32>} : memref<144x256xf32, #tpu.memory_space<vmem>>, vector<16x256xf32>,
    %c0_157 = arith.constant 0 : index
    %c34_158 = arith.constant 34 : index
    %138 = vector.load %arg14[%c0_157, %c34_158] : memref<16x290xf32, #tpu.memory_space<vmem>>, vector<16x256xf32>
    %c1_159 = arith.constant 1 : index
    %c0_160 = arith.constant 0 : index
    %139 = vector.load %arg3[%c1_159, %c0_160] : memref<2x256xf32, #tpu.memory_space<vmem>>, vector<1x256xf32>
    %140 = vector.broadcast %139 : vector<1x256xf32> to vector<16x256xf32>
    %141 = arith.mulf %138, %140 : vector<16x256xf32>
    %c128 = arith.constant 128 : index
    %c0_161 = arith.constant 0 : index
    %142 = vector.load %arg15[%c128, %c0_161] : memref<144x256xf32, #tpu.memory_space<vmem>>, vector<16x256xf32>
    tpu.vector_store %arg15[%c128, %c0_161], %141 {strides = array<i32>} : memref<144x256xf32, #tpu.memory_space<vmem>>, vector<16x256xf32>,
    %c0_162 = arith.constant 0 : index
    %c0_163 = arith.constant 0 : index
    %143 = vector.load %arg15[%c0_162, %c0_163] : memref<144x256xf32, #tpu.memory_space<vmem>>, vector<144x256xf32>
    %c0_164 = arith.constant 0 : index
    %c0_165 = arith.constant 0 : index
    %144 = vector.load %arg9[%c0_164, %c0_165] : memref<16x144xf32, #tpu.memory_space<vmem>>, vector<16x144xf32>
    %cst_166 = arith.constant dense<0.000000e+00> : vector<16x256xf32>
    %145 = tpu.matmul %144, %143, %cst_166 {dimension_numbers = #tpu.dot_dimension_numbers<[1], [0], [0], [1], [0, 0, 1, 1], [], []>} : vector<16x144xf32>, vector<144x256xf32>, vector<16x256xf32> -> vector<16x256xf32>
    %c0_167 = arith.constant 0 : index
    %c0_168 = arith.constant 0 : index
    %146 = vector.load %arg10[%c0_167, %c0_168] : memref<16x1xf32, #tpu.memory_space<vmem>>, vector<16x1xf32>
    %147 = vector.broadcast %146 : vector<16x1xf32> to vector<16x256xf32>
    %148 = arith.addf %145, %147 : vector<16x256xf32>
    %149 = arith.addf %103, %148 : vector<16x256xf32>
    %c0_169 = arith.constant 0 : index
    %c0_170 = arith.constant 0 : index
    %c0_171 = arith.constant 0 : index
    %150 = vector.load %arg13[%c0_169, %c0_170, %c0_171] : memref<1x16x256xf32, #tpu.memory_space<vmem>>, vector<1x16x256xf32>
    %151 = vector.shape_cast %150 : vector<1x16x256xf32> to vector<16x256xf32>
    %152 = vector.shape_cast %149 : vector<16x256xf32> to vector<1x16x256xf32>
    tpu.vector_store %arg13[%c0_169, %c0_170, %c0_171], %152 {strides = array<i32>} : memref<1x16x256xf32, #tpu.memory_space<vmem>>, vector<1x16x256xf32>,
    return
  }
  func.func @transform_0(%arg0: i32) -> (i32, i32, i32) {
    %c0_i32 = arith.constant 0 : i32
    %c0_i32_0 = arith.constant 0 : i32
    %c0_i32_1 = arith.constant 0 : i32
    return %arg0, %c0_i32, %c0_i32_0 : i32, i32, i32
  }
  func.func @transform_1(%arg0: i32) -> (i32, i32, i32) {
    %c0_i32 = arith.constant 0 : i32
    %c0_i32_0 = arith.constant 0 : i32
    %c0_i32_1 = arith.constant 0 : i32
    return %arg0, %c0_i32, %c0_i32_0 : i32, i32, i32
  }
  func.func @transform_2(%arg0: i32) -> (i32, i32) {
    %c0_i32 = arith.constant 0 : i32
    %c0_i32_0 = arith.constant 0 : i32
    %c0_i32_1 = arith.constant 0 : i32
    return %c0_i32, %c0_i32_0 : i32, i32
  }
  func.func @transform_3(%arg0: i32) -> (i32, i32) {
    %c0_i32 = arith.constant 0 : i32
    %c0_i32_0 = arith.constant 0 : i32
    %c0_i32_1 = arith.constant 0 : i32
    return %c0_i32, %c0_i32_0 : i32, i32
  }
  func.func @transform_4(%arg0: i32) -> (i32, i32) {
    %c0_i32 = arith.constant 0 : i32
    %c0_i32_0 = arith.constant 0 : i32
    %c0_i32_1 = arith.constant 0 : i32
    return %c0_i32, %c0_i32_0 : i32, i32
  }
  func.func @transform_5(%arg0: i32) -> (i32, i32) {
    %c0_i32 = arith.constant 0 : i32
    %c0_i32_0 = arith.constant 0 : i32
    %c0_i32_1 = arith.constant 0 : i32
    return %c0_i32, %c0_i32_0 : i32, i32
  }
  func.func @transform_6(%arg0: i32) -> (i32, i32) {
    %c0_i32 = arith.constant 0 : i32
    %c0_i32_0 = arith.constant 0 : i32
    %c0_i32_1 = arith.constant 0 : i32
    return %c0_i32, %c0_i32_0 : i32, i32
  }
  func.func @transform_7(%arg0: i32) -> (i32, i32) {
    %c0_i32 = arith.constant 0 : i32
    %c0_i32_0 = arith.constant 0 : i32
    %c0_i32_1 = arith.constant 0 : i32
    return %c0_i32, %c0_i32_0 : i32, i32
  }
  func.func @transform_8(%arg0: i32) -> (i32, i32) {
    %c0_i32 = arith.constant 0 : i32
    %c0_i32_0 = arith.constant 0 : i32
    %c0_i32_1 = arith.constant 0 : i32
    return %c0_i32, %c0_i32_0 : i32, i32
  }
  func.func @transform_9(%arg0: i32) -> (i32, i32) {
    %c0_i32 = arith.constant 0 : i32
    %c0_i32_0 = arith.constant 0 : i32
    %c0_i32_1 = arith.constant 0 : i32
    return %c0_i32, %c0_i32_0 : i32, i32
  }
  func.func @transform_10(%arg0: i32) -> (i32, i32) {
    %c0_i32 = arith.constant 0 : i32
    %c0_i32_0 = arith.constant 0 : i32
    %c0_i32_1 = arith.constant 0 : i32
    return %c0_i32, %c0_i32_0 : i32, i32
  }
  func.func @transform_11(%arg0: i32) -> (i32, i32) {
    %c0_i32 = arith.constant 0 : i32
    %c0_i32_0 = arith.constant 0 : i32
    %c0_i32_1 = arith.constant 0 : i32
    return %c0_i32, %c0_i32_0 : i32, i32
  }
  func.func @transform_12(%arg0: i32) -> (i32, i32, i32) {
    %c0_i32 = arith.constant 0 : i32
    %c0_i32_0 = arith.constant 0 : i32
    %c0_i32_1 = arith.constant 0 : i32
    return %arg0, %c0_i32, %c0_i32_0 : i32, i32, i32
  }
}

</mosaic_0001>

<llo_original>
// kernel: upsample_block_forward.1
$region0: #{upsample_block_forward.1}
  #allocation0 [shape = 'u32[]', space=smem, size = 0x4, offset = 0x4, fixed_abs, tag = 'smem constant byte address 0x4 - core index']
  #allocation1 [shape = 'u32[72,128]{1,0:T(1,128)}', space=vmem, size = 0x9000, scoped, tag = 'internal scratch']
  #allocation2 [shape = 'f32[16,290]{1,0:T(8,128)}', space=vmem, size = 0x6000, scoped, tag = 'scratch operand']
  #allocation3 [shape = 'f32[144,256]{1,0:T(8,128)}', space=vmem, size = 0x24000, scoped, tag = 'scratch operand']
  %s0 = inlined_call_operand.vmem [shape: f32[2,4,256], index: 0, kind: input, shape index: {}]
  %s1 = inlined_call_operand.vmem [shape: f32[2,8,64], index: 1, kind: input, shape index: {}]
  %s2 = inlined_call_operand.vmem [shape: f32[2,256], index: 2, kind: input, shape index: {}]
  %s3 = inlined_call_operand.vmem [shape: f32[64,256], index: 3, kind: input, shape index: {}]
  %s4 = inlined_call_operand.vmem [shape: f32[8,36], index: 4, kind: input, shape index: {}]
  %s5 = inlined_call_operand.vmem [shape: f32[8,1], index: 5, kind: input, shape index: {}]
  %s6 = inlined_call_operand.vmem [shape: f32[16,72], index: 6, kind: input, shape index: {}]
  %s7 = inlined_call_operand.vmem [shape: f32[16,1], index: 7, kind: input, shape index: {}]
  %s8 = inlined_call_operand.vmem [shape: f32[16,144], index: 8, kind: input, shape index: {}]
  %s9 = inlined_call_operand.vmem [shape: f32[16,1], index: 9, kind: input, shape index: {}]
  %s10 = inlined_call_operand.vmem [shape: f32[16,72], index: 10, kind: input, shape index: {}]
  %s11 = inlined_call_operand.vmem [shape: f32[16,1], index: 11, kind: input, shape index: {}]
  %s12 = inlined_call_operand.vmem [shape: f32[2,16,256], index: 12, kind: output, shape index: {}]
  %s13 = sld [smem:[#allocation0]]
  $region81: #{upsample_block_forward.1} parent=0
    _
  %s15 = ssub.s32 1, %s13
  %s16 = scalar_select 0, %s15, %s13
  loop: start=0, step=1, limit=4
  $region2: #{upsample_block_forward.1} parent=0 // loop_pre_header
    _
  $region3: #{upsample_block_forward.1} parent=0 // loop_header
    %s18 = sphi 0, %s22
    %p19 = scmp.ge.s32.totalorder %s18, 4
    %s28 = sphi 0, %s30
    %s31 = sphi 0, %s28
    %s32 = sphi 0, %s31
    %s48 = sphi 0, %s32
    %s54 = sphi 0, %s56
    %s57 = sphi 0, %s54
    %s58 = sphi 0, %s57
    %s74 = sphi 0, %s58
    %s78 = sphi 0, %s78
    %s80 = sphi 0, %s78
    %s81 = sphi 0, %s80
    %s95 = sphi 0, %s81
    %s99 = sphi 0, %s99
    %s101 = sphi 0, %s99
    %s102 = sphi 0, %s101
    %s116 = sphi 0, %s102
    %s120 = sphi 0, %s120
    %s122 = sphi 0, %s120
    %s123 = sphi 0, %s122
    %s137 = sphi 0, %s123
    %s141 = sphi 0, %s141
    %s143 = sphi 0, %s141
    %s144 = sphi 0, %s143
    %s158 = sphi 0, %s144
    %s162 = sphi 0, %s162
    %s164 = sphi 0, %s162
    %s165 = sphi 0, %s164
    %s179 = sphi 0, %s165
    %s183 = sphi 0, %s183
    %s185 = sphi 0, %s183
    %s186 = sphi 0, %s185
    %s200 = sphi 0, %s186
    %s204 = sphi 0, %s204
    %s206 = sphi 0, %s204
    %s207 = sphi 0, %s206
    %s221 = sphi 0, %s207
    %s225 = sphi 0, %s225
    %s227 = sphi 0, %s225
    %s228 = sphi 0, %s227
    %s242 = sphi 0, %s228
    %s246 = sphi 0, %s246
    %s248 = sphi 0, %s246
    %s249 = sphi 0, %s248
    %s263 = sphi 0, %s249
    %s267 = sphi 0, %s267
    %s269 = sphi 0, %s267
    %s270 = sphi 0, %s269
    %s284 = sphi 0, %s270
    %s290 = sphi 0, %s292
    %s293 = sphi 0, %s290
    %s294 = sphi 0, %s293
    %s310 = sphi 0, %s294
  $region4: #{upsample_block_forward.1} parent=0 // loop_header_branch
    %21 = sbr.rel (%p19) target = $region8
  $region5: #{upsample_block_forward.1} parent=0 // loop_body
    %s23 = ssub.s32 %s18, 1
    %s24 = ssub.s32 %s18, 2
    %s25 = sadd.s32 %s18, 1
    %s26 = ssub.s32 %s18, %s25
    %p27 = scmp.eq.s32.totalorder %s26, 0
    %s29 = sadd.s32 %s28, 1
    %s30 = scalar_select %p27, %s28, %s29
    %p33 = pneg %p27
    %p34 = scmp.eq.s32.totalorder %s18, 1
    %p35 = por %p33, %p34
    %p36 = scmp.ne.s32.totalorder %s28, %s31
    %p37 = scmp.eq.s32.totalorder %s18, 0
    %p38 = por %p36, %p37
    %p39 = scmp.ne.s32.totalorder %s28, %s31
    %p40 = scmp.eq.s32.totalorder %s23, 1
    %p41 = por %p39, %p40
    %p42 = scmp.ne.s32.totalorder %s31, %s32
    %p43 = scmp.eq.s32.totalorder %s23, 0
    %p44 = por %p42, %p43
    %p45 = scmp.ne.s32.totalorder %s31, %s32
    %p46 = scmp.eq.s32.totalorder %s24, 1
    %p47 = por %p45, %p46
    %p49 = scmp.ne.s32.totalorder %s32, %s48
    %p50 = scmp.eq.s32.totalorder %s24, 0
    %p51 = por %p49, %p50
    %s52 = ssub.s32 %s18, %s25
    %p53 = scmp.eq.s32.totalorder %s52, 0
    %s55 = sadd.s32 %s54, 1
    %s56 = scalar_select %p53, %s54, %s55
    %p59 = pneg %p53
    %p60 = scmp.eq.s32.totalorder %s18, 1
    %p61 = por %p59, %p60
    %p62 = scmp.ne.s32.totalorder %s54, %s57
    %p63 = scmp.eq.s32.totalorder %s18, 0
    %p64 = por %p62, %p63
    %p65 = scmp.ne.s32.totalorder %s54, %s57
    %p66 = scmp.eq.s32.totalorder %s23, 1
    %p67 = por %p65, %p66
    %p68 = scmp.ne.s32.totalorder %s57, %s58
    %p69 = scmp.eq.s32.totalorder %s23, 0
    %p70 = por %p68, %p69
    %p71 = scmp.ne.s32.totalorder %s57, %s58
    %p72 = scmp.eq.s32.totalorder %s24, 1
    %p73 = por %p71, %p72
    %p75 = scmp.ne.s32.totalorder %s58, %s74
    %p76 = scmp.eq.s32.totalorder %s24, 0
    %p77 = por %p75, %p76
    %s79 = sadd.s32 %s78, 1
    %p82 = scmp.eq.s32.totalorder %s18, 1
    %p83 = scmp.ne.s32.totalorder %s78, %s80
    %p84 = scmp.eq.s32.totalorder %s18, 0
    %p85 = por %p83, %p84
    %p86 = scmp.ne.s32.totalorder %s78, %s80
    %p87 = scmp.eq.s32.totalorder %s23, 1
    %p88 = por %p86, %p87
    %p89 = scmp.ne.s32.totalorder %s80, %s81
    %p90 = scmp.eq.s32.totalorder %s23, 0
    %p91 = por %p89, %p90
    %p92 = scmp.ne.s32.totalorder %s80, %s81
    %p93 = scmp.eq.s32.totalorder %s24, 1
    %p94 = por %p92, %p93
    %p96 = scmp.ne.s32.totalorder %s81, %s95
    %p97 = scmp.eq.s32.totalorder %s24, 0
    %p98 = por %p96, %p97
    %s100 = sadd.s32 %s99, 1
    %p103 = scmp.eq.s32.totalorder %s18, 1
    %p104 = scmp.ne.s32.totalorder %s99, %s101
    %p105 = scmp.eq.s32.totalorder %s18, 0
    %p106 = por %p104, %p105
    %p107 = scmp.ne.s32.totalorder %s99, %s101
    %p108 = scmp.eq.s32.totalorder %s23, 1
    %p109 = por %p107, %p108
    %p110 = scmp.ne.s32.totalorder %s101, %s102
    %p111 = scmp.eq.s32.totalorder %s23, 0
    %p112 = por %p110, %p111
    %p113 = scmp.ne.s32.totalorder %s101, %s102
    %p114 = scmp.eq.s32.totalorder %s24, 1
    %p115 = por %p113, %p114
    %p117 = scmp.ne.s32.totalorder %s102, %s116
    %p118 = scmp.eq.s32.totalorder %s24, 0
    %p119 = por %p117, %p118
    %s121 = sadd.s32 %s120, 1
    %p124 = scmp.eq.s32.totalorder %s18, 1
    %p125 = scmp.ne.s32.totalorder %s120, %s122
    %p126 = scmp.eq.s32.totalorder %s18, 0
    %p127 = por %p125, %p126
    %p128 = scmp.ne.s32.totalorder %s120, %s122
    %p129 = scmp.eq.s32.totalorder %s23, 1
    %p130 = por %p128, %p129
    %p131 = scmp.ne.s32.totalorder %s122, %s123
    %p132 = scmp.eq.s32.totalorder %s23, 0
    %p133 = por %p131, %p132
    %p134 = scmp.ne.s32.totalorder %s122, %s123
    %p135 = scmp.eq.s32.totalorder %s24, 1
    %p136 = por %p134, %p135
    %p138 = scmp.ne.s32.totalorder %s123, %s137
    %p139 = scmp.eq.s32.totalorder %s24, 0
    %p140 = por %p138, %p139
    %s142 = sadd.s32 %s141, 1
    %p145 = scmp.eq.s32.totalorder %s18, 1
    %p146 = scmp.ne.s32.totalorder %s141, %s143
    %p147 = scmp.eq.s32.totalorder %s18, 0
    %p148 = por %p146, %p147
    %p149 = scmp.ne.s32.totalorder %s141, %s143
    %p150 = scmp.eq.s32.totalorder %s23, 1
    %p151 = por %p149, %p150
    %p152 = scmp.ne.s32.totalorder %s143, %s144
    %p153 = scmp.eq.s32.totalorder %s23, 0
    %p154 = por %p152, %p153
    %p155 = scmp.ne.s32.totalorder %s143, %s144
    %p156 = scmp.eq.s32.totalorder %s24, 1
    %p157 = por %p155, %p156
    %p159 = scmp.ne.s32.totalorder %s144, %s158
    %p160 = scmp.eq.s32.totalorder %s24, 0
    %p161 = por %p159, %p160
    %s163 = sadd.s32 %s162, 1
    %p166 = scmp.eq.s32.totalorder %s18, 1
    %p167 = scmp.ne.s32.totalorder %s162, %s164
    %p168 = scmp.eq.s32.totalorder %s18, 0
    %p169 = por %p167, %p168
    %p170 = scmp.ne.s32.totalorder %s162, %s164
    %p171 = scmp.eq.s32.totalorder %s23, 1
    %p172 = por %p170, %p171
    %p173 = scmp.ne.s32.totalorder %s164, %s165
    %p174 = scmp.eq.s32.totalorder %s23, 0
    %p175 = por %p173, %p174
    %p176 = scmp.ne.s32.totalorder %s164, %s165
    %p177 = scmp.eq.s32.totalorder %s24, 1
    %p178 = por %p176, %p177
    %p180 = scmp.ne.s32.totalorder %s165, %s179
    %p181 = scmp.eq.s32.totalorder %s24, 0
    %p182 = por %p180, %p181
    %s184 = sadd.s32 %s183, 1
    %p187 = scmp.eq.s32.totalorder %s18, 1
    %p188 = scmp.ne.s32.totalorder %s183, %s185
    %p189 = scmp.eq.s32.totalorder %s18, 0
    %p190 = por %p188, %p189
    %p191 = scmp.ne.s32.totalorder %s183, %s185
    %p192 = scmp.eq.s32.totalorder %s23, 1
    %p193 = por %p191, %p192
    %p194 = scmp.ne.s32.totalorder %s185, %s186
    %p195 = scmp.eq.s32.totalorder %s23, 0
    %p196 = por %p194, %p195
    %p197 = scmp.ne.s32.totalorder %s185, %s186
    %p198 = scmp.eq.s32.totalorder %s24, 1
    %p199 = por %p197, %p198
    %p201 = scmp.ne.s32.totalorder %s186, %s200
    %p202 = scmp.eq.s32.totalorder %s24, 0
    %p203 = por %p201, %p202
    %s205 = sadd.s32 %s204, 1
    %p208 = scmp.eq.s32.totalorder %s18, 1
    %p209 = scmp.ne.s32.totalorder %s204, %s206
    %p210 = scmp.eq.s32.totalorder %s18, 0
    %p211 = por %p209, %p210
    %p212 = scmp.ne.s32.totalorder %s204, %s206
    %p213 = scmp.eq.s32.totalorder %s23, 1
    %p214 = por %p212, %p213
    %p215 = scmp.ne.s32.totalorder %s206, %s207
    %p216 = scmp.eq.s32.totalorder %s23, 0
    %p217 = por %p215, %p216
    %p218 = scmp.ne.s32.totalorder %s206, %s207
    %p219 = scmp.eq.s32.totalorder %s24, 1
    %p220 = por %p218, %p219
    %p222 = scmp.ne.s32.totalorder %s207, %s221
    %p223 = scmp.eq.s32.totalorder %s24, 0
    %p224 = por %p222, %p223
    %s226 = sadd.s32 %s225, 1
    %p229 = scmp.eq.s32.totalorder %s18, 1
    %p230 = scmp.ne.s32.totalorder %s225, %s227
    %p231 = scmp.eq.s32.totalorder %s18, 0
    %p232 = por %p230, %p231
    %p233 = scmp.ne.s32.totalorder %s225, %s227
    %p234 = scmp.eq.s32.totalorder %s23, 1
    %p235 = por %p233, %p234
    %p236 = scmp.ne.s32.totalorder %s227, %s228
    %p237 = scmp.eq.s32.totalorder %s23, 0
    %p238 = por %p236, %p237
    %p239 = scmp.ne.s32.totalorder %s227, %s228
    %p240 = scmp.eq.s32.totalorder %s24, 1
    %p241 = por %p239, %p240
    %p243 = scmp.ne.s32.totalorder %s228, %s242
    %p244 = scmp.eq.s32.totalorder %s24, 0
    %p245 = por %p243, %p244
    %s247 = sadd.s32 %s246, 1
    %p250 = scmp.eq.s32.totalorder %s18, 1
    %p251 = scmp.ne.s32.totalorder %s246, %s248
    %p252 = scmp.eq.s32.totalorder %s18, 0
    %p253 = por %p251, %p252
    %p254 = scmp.ne.s32.totalorder %s246, %s248
    %p255 = scmp.eq.s32.totalorder %s23, 1
    %p256 = por %p254, %p255
    %p257 = scmp.ne.s32.totalorder %s248, %s249
    %p258 = scmp.eq.s32.totalorder %s23, 0
    %p259 = por %p257, %p258
    %p260 = scmp.ne.s32.totalorder %s248, %s249
    %p261 = scmp.eq.s32.totalorder %s24, 1
    %p262 = por %p260, %p261
    %p264 = scmp.ne.s32.totalorder %s249, %s263
    %p265 = scmp.eq.s32.totalorder %s24, 0
    %p266 = por %p264, %p265
    %s268 = sadd.s32 %s267, 1
    %p271 = scmp.eq.s32.totalorder %s18, 1
    %p272 = scmp.ne.s32.totalorder %s267, %s269
    %p273 = scmp.eq.s32.totalorder %s18, 0
    %p274 = por %p272, %p273
    %p275 = scmp.ne.s32.totalorder %s267, %s269
    %p276 = scmp.eq.s32.totalorder %s23, 1
    %p277 = por %p275, %p276
    %p278 = scmp.ne.s32.totalorder %s269, %s270
    %p279 = scmp.eq.s32.totalorder %s23, 0
    %p280 = por %p278, %p279
    %p281 = scmp.ne.s32.totalorder %s269, %s270
    %p282 = scmp.eq.s32.totalorder %s24, 1
    %p283 = por %p281, %p282
    %p285 = scmp.ne.s32.totalorder %s270, %s284
    %p286 = scmp.eq.s32.totalorder %s24, 0
    %p287 = por %p285, %p286
    %s288 = ssub.s32 %s18, %s25
    %p289 = scmp.eq.s32.totalorder %s288, 0
    %s291 = sadd.s32 %s290, 1
    %s292 = scalar_select %p289, %s290, %s291
    %p295 = pneg %p289
    %p296 = scmp.eq.s32.totalorder %s18, 1
    %p297 = por %p295, %p296
    %p298 = scmp.ne.s32.totalorder %s290, %s293
    %p299 = scmp.eq.s32.totalorder %s18, 0
    %p300 = por %p298, %p299
    %p301 = scmp.ne.s32.totalorder %s290, %s293
    %p302 = scmp.eq.s32.totalorder %s23, 1
    %p303 = por %p301, %p302
    %p304 = scmp.ne.s32.totalorder %s293, %s294
    %p305 = scmp.eq.s32.totalorder %s23, 0
    %p306 = por %p304, %p305
    %p307 = scmp.ne.s32.totalorder %s293, %s294
    %p308 = scmp.eq.s32.totalorder %s24, 1
    %p309 = por %p307, %p308
    %p311 = scmp.ne.s32.totalorder %s294, %s310
    %p312 = scmp.eq.s32.totalorder %s24, 0
    %p313 = por %p311, %p312
    %p314 = scmp.le.s32.totalorder 1, %s18
    %p315 = scmp.lt.s32.totalorder %s18, 3
    %p316 = pnand %p314, %p315
    %p317 = pneg %p316
    // Predicated region
    $region9: #{upsample_block_forward.1} parent=5 // pred_check
      _
    $region10: #{upsample_block_forward.1} parent=5 // pred_check_branch
      %319 = sbr.rel (%p316) target = $region12
    $region11: #{upsample_block_forward.1} parent=5 // pred_region
      %s320 = ssub.s32 %s18, 1
      // Predicated region
      $region13: #{upsample_block_forward.1} parent=11 // pred_check
        %p321 = pneg %p91
      $region14: #{upsample_block_forward.1} parent=11 // pred_check_branch
        %323 = sbr.rel (%p321) target = $region16
      $region15: #{upsample_block_forward.1} parent=11 // pred_region
        _
      $region16: #{upsample_block_forward.1} parent=11 // pred_fallthru
        _
      // Predicated region
      $region17: #{upsample_block_forward.1} parent=11 // pred_check
        %p324 = pneg %p112
      $region18: #{upsample_block_forward.1} parent=11 // pred_check_branch
        %326 = sbr.rel (%p324) target = $region20
      $region19: #{upsample_block_forward.1} parent=11 // pred_region
        _
      $region20: #{upsample_block_forward.1} parent=11 // pred_fallthru
        _
      // Predicated region
      $region21: #{upsample_block_forward.1} parent=11 // pred_check
        %p327 = pneg %p133
      $region22: #{upsample_block_forward.1} parent=11 // pred_check_branch
        %329 = sbr.rel (%p327) target = $region24
      $region23: #{upsample_block_forward.1} parent=11 // pred_region
        _
      $region24: #{upsample_block_forward.1} parent=11 // pred_fallthru
        _
      // Predicated region
      $region25: #{upsample_block_forward.1} parent=11 // pred_check
        %p330 = pneg %p154
      $region26: #{upsample_block_forward.1} parent=11 // pred_check_branch
        %332 = sbr.rel (%p330) target = $region28
      $region27: #{upsample_block_forward.1} parent=11 // pred_region
        _
      $region28: #{upsample_block_forward.1} parent=11 // pred_fallthru
        _
      // Predicated region
      $region29: #{upsample_block_forward.1} parent=11 // pred_check
        %p333 = pneg %p175
      $region30: #{upsample_block_forward.1} parent=11 // pred_check_branch
        %335 = sbr.rel (%p333) target = $region32
      $region31: #{upsample_block_forward.1} parent=11 // pred_region
        _
      $region32: #{upsample_block_forward.1} parent=11 // pred_fallthru
        _
      // Predicated region
      $region33: #{upsample_block_forward.1} parent=11 // pred_check
        %p336 = pneg %p196
      $region34: #{upsample_block_forward.1} parent=11 // pred_check_branch
        %338 = sbr.rel (%p336) target = $region36
      $region35: #{upsample_block_forward.1} parent=11 // pred_region
        _
      $region36: #{upsample_block_forward.1} parent=11 // pred_fallthru
        _
      // Predicated region
      $region37: #{upsample_block_forward.1} parent=11 // pred_check
        %p339 = pneg %p217
      $region38: #{upsample_block_forward.1} parent=11 // pred_check_branch
        %341 = sbr.rel (%p339) target = $region40
      $region39: #{upsample_block_forward.1} parent=11 // pred_region
        _
      $region40: #{upsample_block_forward.1} parent=11 // pred_fallthru
        _
      // Predicated region
      $region41: #{upsample_block_forward.1} parent=11 // pred_check
        %p342 = pneg %p238
      $region42: #{upsample_block_forward.1} parent=11 // pred_check_branch
        %344 = sbr.rel (%p342) target = $region44
      $region43: #{upsample_block_forward.1} parent=11 // pred_region
        _
      $region44: #{upsample_block_forward.1} parent=11 // pred_fallthru
        _
      // Predicated region
      $region45: #{upsample_block_forward.1} parent=11 // pred_check
        %p345 = pneg %p259
      $region46: #{upsample_block_forward.1} parent=11 // pred_check_branch
        %347 = sbr.rel (%p345) target = $region48
      $region47: #{upsample_block_forward.1} parent=11 // pred_region
        _
      $region48: #{upsample_block_forward.1} parent=11 // pred_fallthru
        _
      // Predicated region
      $region49: #{upsample_block_forward.1} parent=11 // pred_check
        %p348 = pneg %p280
      $region50: #{upsample_block_forward.1} parent=11 // pred_check_branch
        %350 = sbr.rel (%p348) target = $region52
      $region51: #{upsample_block_forward.1} parent=11 // pred_region
        _
      $region52: #{upsample_block_forward.1} parent=11 // pred_fallthru
        _
    $region12: #{upsample_block_forward.1} parent=5 // pred_fallthru
      _
    %p351 = scmp.lt.s32.totalorder %s18, 2
    // Predicated region
    $region53: #{upsample_block_forward.1} parent=5 // pred_check
      %p352 = pneg %p351
    $region54: #{upsample_block_forward.1} parent=5 // pred_check_branch
      %354 = sbr.rel (%p352) target = $region56
    $region55: #{upsample_block_forward.1} parent=5 // pred_region
      // Predicated region
      $region57: #{upsample_block_forward.1} parent=55 // pred_check
        %p355 = pneg %p38
      $region58: #{upsample_block_forward.1} parent=55 // pred_check_branch
        %357 = sbr.rel (%p355) target = $region60
      $region59: #{upsample_block_forward.1} parent=55 // pred_region
        %p358 = scmp.lt.s32.totalorder %s18, 1
        %s359 = scalar_select %p358, %s18, 1
        %s360 = smul.addr %s359, 2
        %s361 = smul.addr %s360, 4
        %s362 = scalar_lea.vmem %s0, %s361
      $region60: #{upsample_block_forward.1} parent=55 // pred_fallthru
        _
      // Predicated region
      $region61: #{upsample_block_forward.1} parent=55 // pred_check
        %p363 = pneg %p64
      $region62: #{upsample_block_forward.1} parent=55 // pred_check_branch
        %365 = sbr.rel (%p363) target = $region64
      $region63: #{upsample_block_forward.1} parent=55 // pred_region
        %p366 = scmp.lt.s32.totalorder %s18, 1
        %s367 = scalar_select %p366, %s18, 1
        %s368 = smul.addr %s367, 8
        %s369 = scalar_lea.vmem %s1, %s368
      $region64: #{upsample_block_forward.1} parent=55 // pred_fallthru
        _
    $region56: #{upsample_block_forward.1} parent=5 // pred_fallthru
      _
    %p370 = scmp.le.s32.totalorder 1, %s18
    %p371 = scmp.lt.s32.totalorder %s18, 3
    %p372 = pnand %p370, %p371
    %p373 = pneg %p372
    // Predicated region
    $region65: #{upsample_block_forward.1} parent=5 // pred_check
      _
    $region66: #{upsample_block_forward.1} parent=5 // pred_check_branch
      %375 = sbr.rel (%p372) target = $region68
    $region67: #{upsample_block_forward.1} parent=5 // pred_region
      %s376 = ssub.s32 %s18, 1
      %p377 = scmp.lt.s32.totalorder %s23, 1
      %s378 = scalar_select %p377, %s23, 1
      %s379 = smul.addr %s378, 2
      %s380 = smul.addr %s379, 4
      %s381 = scalar_lea.vmem %s0, %s380
      %p382 = pneg %p44
      %p383 = pneg %p41
      %p384 = scmp.lt.s32.totalorder %s23, 1
      %s385 = scalar_select %p384, %s23, 1
      %s386 = smul.addr %s385, 8
      %s387 = scalar_lea.vmem %s1, %s386
      %p388 = pneg %p70
      %p389 = pneg %p67
      %p390 = pneg %p91
      %p391 = pneg %p88
      %p392 = pneg %p112
      %p393 = pneg %p109
      %p394 = pneg %p133
      %p395 = pneg %p130
      %p396 = pneg %p154
      %p397 = pneg %p151
      %p398 = pneg %p175
      %p399 = pneg %p172
      %p400 = pneg %p196
      %p401 = pneg %p193
      %p402 = pneg %p217
      %p403 = pneg %p214
      %p404 = pneg %p238
      %p405 = pneg %p235
      %p406 = pneg %p259
      %p407 = pneg %p256
      %p408 = pneg %p280
      %p409 = pneg %p277
      %p410 = pneg %p306
      %p411 = pneg %p303
      %p412 = scmp.lt.s32.totalorder %s23, 1
      %s413 = scalar_select %p412, %s23, 1
      %s414 = smul.addr %s413, 4
      %s415 = smul.addr %s414, 8
      %s416 = scalar_lea.vmem %s12, %s415
      %p417 = scmp.lt.s32.totalorder %s23, 1
      %s418 = scalar_select %p417, %s23, 1
      %s419 = smul.addr %s418, 2
      %s420 = smul.addr %s419, 4
      %s421 = scalar_lea.vmem %s0, %s420
      %p422 = scmp.lt.s32.totalorder %s23, 1
      %s423 = scalar_select %p422, %s23, 1
      %s424 = smul.addr %s423, 8
      %s425 = scalar_lea.vmem %s1, %s424
      %p426 = scmp.lt.s32.totalorder %s23, 1
      %s427 = scalar_select %p426, %s23, 1
      %s428 = smul.addr %s427, 4
      %s429 = smul.addr %s428, 8
      %s430 = scalar_lea.vmem %s12, %s429
      %vm431 = vcmask 138240
      %432 = vst.msk [vmem:[#allocation2] sm:$0xff] %vm431, 0.0
      %433 = vst.msk [vmem:[#allocation2 + $0x18] sm:$0xff] %vm431, 0.0
      %vm434 = vcmask 277640
      %435 = vst.msk [vmem:[#allocation2 + $0x10] sm:$0xff] %vm434, 0.0
      %436 = vst.msk [vmem:[#allocation2 + $0x28] sm:$0xff] %vm434, 0.0
      %v437 = vld [vmem:[%s425] sm:$0xff]
      %v438 = vld [vmem:[%s3] sm:$0xff]
      %v439 = vld [vmem:[%s3 + $0x8] sm:$0xff]
      %v440 = vld [vmem:[%s3 + $0x10] sm:$0xff]
      %v441 = vld [vmem:[%s3 + $0x18] sm:$0xff]
      %v442 = vld [vmem:[%s3 + $0x20] sm:$0xff]
      %v443 = vld [vmem:[%s3 + $0x28] sm:$0xff]
      %v444 = vld [vmem:[%s3 + $0x30] sm:$0xff]
      %v445 = vld [vmem:[%s3 + $0x38] sm:$0xff]
      %v446 = vld [vmem:[%s3 + $0x40] sm:$0xff]
      %v447 = vld [vmem:[%s3 + $0x48] sm:$0xff]
      %v448 = vld [vmem:[%s3 + $0x50] sm:$0xff]
      %v449 = vld [vmem:[%s3 + $0x58] sm:$0xff]
      %v450 = vld [vmem:[%s3 + $0x60] sm:$0xff]
      %v451 = vld [vmem:[%s3 + $0x68] sm:$0xff]
      %v452 = vld [vmem:[%s3 + $0x70] sm:$0xff]
      %v453 = vld [vmem:[%s3 + $0x78] sm:$0xff]
      %vm454 = vcmask 523264
      %v456 = vsel %vm454, %v437, 0
      %458 = vmatpush.msra.mxu0 0.0
      %459 = vmatpush.msra.mxu0 0.0
      %460 = vmatpush.msra.mxu0 0.0
      %461 = vmatpush.msra.mxu0 0.0
      %462 = vmatpush.msra.mxu0 0.0
      %463 = vmatpush.msra.mxu0 0.0
      %464 = vmatpush.msra.mxu0 0.0
      %465 = vmatpush.msra.mxu0 0.0
      %466 = vmatpush.msra.mxu0 %v452
      %467 = vmatpush.msra.mxu0 %v450
      %468 = vmatpush.msra.mxu0 %v448
      %469 = vmatpush.msra.mxu0 %v446
      %470 = vmatpush.msra.mxu0 %v444
      %471 = vmatpush.msra.mxu0 %v442
      %472 = vmatpush.msra.mxu0 %v440
      %473 = vmatpush.msra.mxu0 %v438
      %474 = vmatmul.f32.gmra.mxu0 %v456
      %v475 = vpop.f32.mrf.mxu0
      %v476 = vadd.f32 0.0, %v475
      %477 = vdwg.mxu0
      %478 = vmatpush.msra.mxu0 0.0
      %479 = vmatpush.msra.mxu0 0.0
      %480 = vmatpush.msra.mxu0 0.0
      %481 = vmatpush.msra.mxu0 0.0
      %482 = vmatpush.msra.mxu0 0.0
      %483 = vmatpush.msra.mxu0 0.0
      %484 = vmatpush.msra.mxu0 0.0
      %485 = vmatpush.msra.mxu0 0.0
      %486 = vmatpush.msra.mxu0 %v453
      %487 = vmatpush.msra.mxu0 %v451
      %488 = vmatpush.msra.mxu0 %v449
      %489 = vmatpush.msra.mxu0 %v447
      %490 = vmatpush.msra.mxu0 %v445
      %491 = vmatpush.msra.mxu0 %v443
      %492 = vmatpush.msra.mxu0 %v441
      %493 = vmatpush.msra.mxu0 %v439
      %494 = vmatmul.f32.gmra.mxu0 %v456
      %v495 = vpop.f32.mrf.mxu0
      %v496 = vadd.f32 0.0, %v495
      %497 = vdwg.mxu0
      %v498 = vld [vmem:[%s421] sm:$0xff]
      %500 = vst [vmem:[#allocation1] ss:$2 sm:$0xff] %v498
      %v501 = vld.sshfl [vmem:[#allocation1] sm:$0xff pattern:$0x75316420]
      %v502 = vld.sshfl [vmem:[#allocation1 + $0x8] sm:$0xff pattern:$0x75316420]
      %503 = vrot.lane.b32.xlu0 %v501, 17
      %v504 = vpop.permute.xlu0 %503
      %505 = vrot.lane.b32.xlu0 %v502, 17
      %v506 = vpop.permute.xlu0 %505
      %v507 = vsel %vm431, %v504, %v506
      %vm511 = vcmask 1043592
      %512 = vst.msk [vmem:[#allocation2] sm:$0xf] %vm511, %v504
      %513 = vst [vmem:[#allocation2 + $0x8] sm:$0xf] %v507
      %vm514 = vcmask 134144
      %515 = vst.msk [vmem:[#allocation2 + $0x10] sm:$0xf] %vm514, %v506
      %v516 = vld [vmem:[#allocation2] sm:$0xf]
      %v517 = vld [vmem:[#allocation2 + $0x8] sm:$0xf]
      %v518 = vld [vmem:[%s2] ss:$2 sm:$0x3]
      %v520 = vperm.slane %v518, 0
      %v521 = vperm.slane %v518, 1
      %v524 = vmul.f32 %v516, %v520
      %v525 = vmul.f32 %v517, %v521
      %526 = vst [vmem:[#allocation3] sm:$0xf] %v524
      %527 = vst [vmem:[#allocation3 + $0x8] sm:$0xf] %v525
      %v528 = vld [vmem:[#allocation2] sm:$0xf]
      %v529 = vld [vmem:[#allocation2 + $0x8] sm:$0xf]
      %v530 = vld [vmem:[#allocation2 + $0x10] sm:$0xf]
      %v534 = vrot.slane %v528, 4
      %v535 = vrot.slane %v529, 4
      %v536 = vrot.slane %v530, 4
      %537 = vrot.lane.b32.xlu0 %v534, 127
      %v538 = vpop.permute.xlu0 %537
      %539 = vrot.lane.b32.xlu0 %v535, 127
      %v540 = vpop.permute.xlu0 %539
      %541 = vrot.lane.b32.xlu0 %v536, 127
      %v542 = vpop.permute.xlu0 %541
      %vm543 = vcmask 1039360
      %v544 = vsel %vm543, %v538, %v540
      %v545 = vsel %vm543, %v540, %v542
      %548 = vst [vmem:[#allocation3] sm:$0xf0] %v544
      %549 = vst [vmem:[#allocation3 + $0x8] sm:$0xf0] %v545
      %v550 = vld [vmem:[#allocation2] sm:$0xf]
      %v551 = vld [vmem:[#allocation2 + $0x8] sm:$0xf]
      %v552 = vld [vmem:[#allocation2 + $0x10] sm:$0xf]
      %s553 = scalar_lea.vmem %s2, 1
      %v554 = vld [vmem:[%s553] ss:$2 sm:$0x3]
      %v556 = vperm.slane %v554, 0
      %v557 = vperm.slane %v554, 1
      %558 = vrot.lane.b32.xlu0 %v556, 2
      %v559 = vpop.permute.xlu0 %558
      %560 = vrot.lane.b32.xlu0 %v557, 2
      %v561 = vpop.permute.xlu0 %560
      %vm562 = vcmask 15360
      %v563 = vsel %vm562, %v559, %v561
      %v567 = vmul.f32 %v550, %v559
      %v568 = vmul.f32 %v551, %v563
      %v569 = vmul.f32 %v552, %v561
      %573 = vrot.lane.b32.xlu0 %v567, 126
      %v574 = vpop.permute.xlu0 %573
      %575 = vrot.lane.b32.xlu0 %v568, 126
      %v576 = vpop.permute.xlu0 %575
      %577 = vrot.lane.b32.xlu0 %v569, 126
      %v578 = vpop.permute.xlu0 %577
      %vm579 = vcmask 1031168
      %v580 = vsel %vm579, %v574, %v576
      %v581 = vsel %vm579, %v576, %v578
      %584 = vst [vmem:[#allocation3 + $0x10] sm:$0xf] %v580
      %585 = vst [vmem:[#allocation3 + $0x18] sm:$0xf] %v581
      %v586 = vld [vmem:[#allocation2] sm:$0xf]
      %v587 = vld [vmem:[#allocation2 + $0x8] sm:$0xf]
      %v588 = vld [vmem:[#allocation2 + $0x10] sm:$0xf]
      %v589 = vld [vmem:[%s2] ss:$2 sm:$0x3]
      %v591 = vperm.slane %v589, 0
      %v592 = vperm.slane %v589, 1
      %593 = vrot.lane.b32.xlu0 %v591, 16
      %v594 = vpop.permute.xlu0 %593
      %595 = vrot.lane.b32.xlu0 %v592, 16
      %v596 = vpop.permute.xlu0 %595
      %vm597 = vcmask 130048
      %v598 = vsel %vm597, %v594, %v596
      %v602 = vmul.f32 %v586, %v594
      %v603 = vmul.f32 %v587, %v598
      %v604 = vmul.f32 %v588, %v596
      %v608 = vrot.slane %v602, 4
      %v609 = vrot.slane %v603, 4
      %v610 = vrot.slane %v604, 4
      %611 = vrot.lane.b32.xlu0 %v608, 112
      %v612 = vpop.permute.xlu0 %611
      %613 = vrot.lane.b32.xlu0 %v609, 112
      %v614 = vpop.permute.xlu0 %613
      %615 = vrot.lane.b32.xlu0 %v610, 112
      %v616 = vpop.permute.xlu0 %615
      %vm617 = vcmask 916480
      %v618 = vsel %vm617, %v612, %v614
      %v619 = vsel %vm617, %v614, %v616
      %622 = vst [vmem:[#allocation3 + $0x10] sm:$0xf0] %v618
      %623 = vst [vmem:[#allocation3 + $0x18] sm:$0xf0] %v619
      %v624 = vld [vmem:[#allocation2] sm:$0xf]
      %v625 = vld [vmem:[#allocation2 + $0x8] sm:$0xf]
      %v626 = vld [vmem:[#allocation2 + $0x10] sm:$0xf]
      %630 = vrot.lane.b32.xlu0 %v624, 111
      %v631 = vpop.permute.xlu0 %630
      %632 = vrot.lane.b32.xlu0 %v625, 111
      %v633 = vpop.permute.xlu0 %632
      %634 = vrot.lane.b32.xlu0 %v626, 111
      %v635 = vpop.permute.xlu0 %634
      %vm636 = vcmask 908288
      %v637 = vsel %vm636, %v631, %v633
      %v638 = vsel %vm636, %v633, %v635
      %641 = vst [vmem:[#allocation3 + $0x20] sm:$0xf] %v637
      %642 = vst [vmem:[#allocation3 + $0x28] sm:$0xf] %v638
      %v643 = vld [vmem:[#allocation2] sm:$0xf]
      %v644 = vld [vmem:[#allocation2 + $0x8] sm:$0xf]
      %v645 = vld [vmem:[#allocation2 + $0x10] sm:$0xf]
      %v646 = vld [vmem:[%s553] ss:$2 sm:$0x3]
      %v648 = vperm.slane %v646, 0
      %v649 = vperm.slane %v646, 1
      %650 = vrot.lane.b32.xlu0 %v648, 18
      %v651 = vpop.permute.xlu0 %650
      %652 = vrot.lane.b32.xlu0 %v649, 18
      %v653 = vpop.permute.xlu0 %652
      %vm654 = vcmask 146432
      %v655 = vsel %vm654, %v651, %v653
      %v659 = vmul.f32 %v643, %v651
      %v660 = vmul.f32 %v644, %v655
      %v661 = vmul.f32 %v645, %v653
      %v665 = vrot.slane %v659, 4
      %v666 = vrot.slane %v660, 4
      %v667 = vrot.slane %v661, 4
      %668 = vrot.lane.b32.xlu0 %v665, 110
      %v669 = vpop.permute.xlu0 %668
      %670 = vrot.lane.b32.xlu0 %v666, 110
      %v671 = vpop.permute.xlu0 %670
      %672 = vrot.lane.b32.xlu0 %v667, 110
      %v673 = vpop.permute.xlu0 %672
      %vm674 = vcmask 900096
      %v675 = vsel %vm674, %v669, %v671
      %v676 = vsel %vm674, %v671, %v673
      %679 = vst [vmem:[#allocation3 + $0x20] sm:$0xf0] %v675
      %680 = vst [vmem:[#allocation3 + $0x28] sm:$0xf0] %v676
      %v681 = vld [vmem:[#allocation2] sm:$0xf]
      %v682 = vld [vmem:[#allocation2 + $0x8] sm:$0xf]
      %v683 = vld [vmem:[#allocation2 + $0x10] sm:$0xf]
      %v684 = vld [vmem:[%s2] ss:$2 sm:$0x3]
      %v686 = vperm.slane %v684, 0
      %v687 = vperm.slane %v684, 1
      %688 = vrot.lane.b32.xlu0 %v686, 32
      %v689 = vpop.permute.xlu0 %688
      %690 = vrot.lane.b32.xlu0 %v687, 32
      %v691 = vpop.permute.xlu0 %690
      %vm692 = vcmask 261120
      %v693 = vsel %vm692, %v689, %v691
      %v697 = vmul.f32 %v681, %v689
      %v698 = vmul.f32 %v682, %v693
      %v699 = vmul.f32 %v683, %v691
      %703 = vrot.lane.b32.xlu0 %v697, 96
      %v704 = vpop.permute.xlu0 %703
      %705 = vrot.lane.b32.xlu0 %v698, 96
      %v706 = vpop.permute.xlu0 %705
      %707 = vrot.lane.b32.xlu0 %v699, 96
      %v708 = vpop.permute.xlu0 %707
      %vm709 = vcmask 785408
      %v710 = vsel %vm709, %v704, %v706
      %v711 = vsel %vm709, %v706, %v708
      %714 = vst [vmem:[#allocation3 + $0x30] sm:$0xf] %v710
      %715 = vst [vmem:[#allocation3 + $0x38] sm:$0xf] %v711
      %v716 = vld [vmem:[#allocation2] sm:$0xf]
      %v717 = vld [vmem:[#allocation2 + $0x8] sm:$0xf]
      %v718 = vld [vmem:[#allocation2 + $0x10] sm:$0xf]
      %v722 = vrot.slane %v716, 4
      %v723 = vrot.slane %v717, 4
      %v724 = vrot.slane %v718, 4
      %725 = vrot.lane.b32.xlu0 %v722, 95
      %v726 = vpop.permute.xlu0 %725
      %727 = vrot.lane.b32.xlu0 %v723, 95
      %v728 = vpop.permute.xlu0 %727
      %729 = vrot.lane.b32.xlu0 %v724, 95
      %v730 = vpop.permute.xlu0 %729
      %vm731 = vcmask 777216
      %v732 = vsel %vm731, %v726, %v728
      %v733 = vsel %vm731, %v728, %v730
      %736 = vst [vmem:[#allocation3 + $0x30] sm:$0xf0] %v732
      %737 = vst [vmem:[#allocation3 + $0x38] sm:$0xf0] %v733
      %v738 = vld [vmem:[#allocation2] sm:$0xf]
      %v739 = vld [vmem:[#allocation2 + $0x8] sm:$0xf]
      %v740 = vld [vmem:[#allocation2 + $0x10] sm:$0xf]
      %v741 = vld [vmem:[%s553] ss:$2 sm:$0x3]
      %v743 = vperm.slane %v741, 0
      %v744 = vperm.slane %v741, 1
      %745 = vrot.lane.b32.xlu0 %v743, 34
      %v746 = vpop.permute.xlu0 %745
      %747 = vrot.lane.b32.xlu0 %v744, 34
      %v748 = vpop.permute.xlu0 %747
      %vm749 = vcmask 277504
      %v750 = vsel %vm749, %v746, %v748
      %v754 = vmul.f32 %v738, %v746
      %v755 = vmul.f32 %v739, %v750
      %v756 = vmul.f32 %v740, %v748
      %760 = vrot.lane.b32.xlu0 %v754, 94
      %v761 = vpop.permute.xlu0 %760
      %762 = vrot.lane.b32.xlu0 %v755, 94
      %v763 = vpop.permute.xlu0 %762
      %764 = vrot.lane.b32.xlu0 %v756, 94
      %v765 = vpop.permute.xlu0 %764
      %vm766 = vcmask 769024
      %v767 = vsel %vm766, %v761, %v763
      %v768 = vsel %vm766, %v763, %v765
      %771 = vst [vmem:[#allocation3 + $0x40] sm:$0xf] %v767
      %772 = vst [vmem:[#allocation3 + $0x48] sm:$0xf] %v768
      %v773 = vld [vmem:[#allocation3] sm:$0xff]
      %v774 = vld [vmem:[#allocation3 + $0x8] sm:$0xff]
      %v775 = vld [vmem:[#allocation3 + $0x10] sm:$0xff]
      %v776 = vld [vmem:[#allocation3 + $0x18] sm:$0xff]
      %v777 = vld [vmem:[#allocation3 + $0x20] sm:$0xff]
      %v778 = vld [vmem:[#allocation3 + $0x28] sm:$0xff]
      %v779 = vld [vmem:[#allocation3 + $0x30] sm:$0xff]
      %v780 = vld [vmem:[#allocation3 + $0x38] sm:$0xff]
      %v781 = vld [vmem:[#allocation3 + $0x40] sm:$0xf]
      %v782 = vld [vmem:[#allocation3 + $0x48] sm:$0xf]
      %v783 = vld [vmem:[%s4] sm:$0xff]
      %v784 = vld [vmem:[%s5] sm:$0xff]
      %786 = vset.pattern.permute.xlu0 0
      %787 = vperm.xlu0 %786, %v784
      %v788 = vpop.permute.xlu0 %787
      %vm790 = vcmask 293888
      %v792 = vsel %vm790, %v783, 0
      %vm794 = vcmask 1043456
      %v796 = vsel %vm794, %v781, 0
      %v799 = vsel %vm794, %v782, 0
      %801 = vmatpush.msra.mxu0 0.0
      %802 = vmatpush.msra.mxu0 0.0
      %803 = vmatpush.msra.mxu0 0.0
      %804 = vmatpush.msra.mxu0 0.0
      %805 = vmatpush.msra.mxu0 0.0
      %806 = vmatpush.msra.mxu0 0.0
      %807 = vmatpush.msra.mxu0 0.0
      %808 = vmatpush.msra.mxu0 0.0
      %809 = vmatpush.msra.mxu0 0.0
      %810 = vmatpush.msra.mxu0 0.0
      %811 = vmatpush.msra.mxu0 0.0
      %812 = vmatpush.msra.mxu0 %v796
      %813 = vmatpush.msra.mxu0 %v779
      %814 = vmatpush.msra.mxu0 %v777
      %815 = vmatpush.msra.mxu0 %v775
      %816 = vmatpush.msra.mxu0 %v773
      %817 = vmatmul.f32.gmra.mxu0 %v792
      %v818 = vpop.f32.mrf.mxu0
      %v819 = vadd.f32 %v788, %v818
      %820 = vdwg.mxu0
      %821 = vmatpush.msra.mxu0 0.0
      %822 = vmatpush.msra.mxu0 0.0
      %823 = vmatpush.msra.mxu0 0.0
      %824 = vmatpush.msra.mxu0 0.0
      %825 = vmatpush.msra.mxu0 0.0
      %826 = vmatpush.msra.mxu0 0.0
      %827 = vmatpush.msra.mxu0 0.0
      %828 = vmatpush.msra.mxu0 0.0
      %829 = vmatpush.msra.mxu0 0.0
      %830 = vmatpush.msra.mxu0 0.0
      %831 = vmatpush.msra.mxu0 0.0
      %832 = vmatpush.msra.mxu0 %v799
      %833 = vmatpush.msra.mxu0 %v780
      %834 = vmatpush.msra.mxu0 %v778
      %835 = vmatpush.msra.mxu0 %v776
      %836 = vmatpush.msra.mxu0 %v774
      %837 = vmatmul.f32.gmra.mxu0 %v792
      %v838 = vpop.f32.mrf.mxu0
      %v839 = vadd.f32 %v788, %v838
      %840 = vdwg.mxu0
      %v841 = vadd.f32 %v819, %v476
      %v842 = vadd.f32 %v839, %v496
      %845 = vrot.lane.b32.xlu0 %v841, 17
      %v846 = vpop.permute.xlu0 %845
      %847 = vrot.lane.b32.xlu0 %v842, 17
      %v848 = vpop.permute.xlu0 %847
      %v849 = vsel %vm431, %v846, %v848
      %vm853 = vcmask 1047688
      %854 = vst.msk [vmem:[#allocation2] sm:$0xff] %vm853, %v846
      %855 = vst [vmem:[#allocation2 + $0x8] sm:$0xff] %v849
      %856 = vst.msk [vmem:[#allocation2 + $0x10] sm:$0xff] %vm431, %v848
      %v857 = vld [vmem:[#allocation2] sm:$0xff]
      %v858 = vld [vmem:[#allocation2 + $0x8] sm:$0xff]
      %v859 = vld [vmem:[%s2] ss:$2 sm:$0x3]
      %v861 = vperm.slane %v859, 0
      %v862 = vperm.slane %v859, 1
      %v865 = vmul.f32 %v857, %v861
      %v866 = vmul.f32 %v858, %v862
      %867 = vst [vmem:[#allocation3] sm:$0xff] %v865
      %868 = vst [vmem:[#allocation3 + $0x8] sm:$0xff] %v866
      %v869 = vld [vmem:[#allocation2] sm:$0xff]
      %v870 = vld [vmem:[#allocation2 + $0x8] sm:$0xff]
      %v871 = vld [vmem:[#allocation2 + $0x10] sm:$0xff]
      %875 = vrot.lane.b32.xlu0 %v869, 127
      %v876 = vpop.permute.xlu0 %875
      %877 = vrot.lane.b32.xlu0 %v870, 127
      %v878 = vpop.permute.xlu0 %877
      %879 = vrot.lane.b32.xlu0 %v871, 127
      %v880 = vpop.permute.xlu0 %879
      %v881 = vsel %vm543, %v876, %v878
      %v882 = vsel %vm543, %v878, %v880
      %885 = vst [vmem:[#allocation3 + $0x10] sm:$0xff] %v881
      %886 = vst [vmem:[#allocation3 + $0x18] sm:$0xff] %v882
      %v887 = vld [vmem:[#allocation2] sm:$0xff]
      %v888 = vld [vmem:[#allocation2 + $0x8] sm:$0xff]
      %v889 = vld [vmem:[#allocation2 + $0x10] sm:$0xff]
      %v890 = vld [vmem:[%s553] ss:$2 sm:$0x3]
      %v892 = vperm.slane %v890, 0
      %v893 = vperm.slane %v890, 1
      %894 = vrot.lane.b32.xlu0 %v892, 2
      %v895 = vpop.permute.xlu0 %894
      %896 = vrot.lane.b32.xlu0 %v893, 2
      %v897 = vpop.permute.xlu0 %896
      %v898 = vsel %vm562, %v895, %v897
      %v902 = vmul.f32 %v887, %v895
      %v903 = vmul.f32 %v888, %v898
      %v904 = vmul.f32 %v889, %v897
      %908 = vrot.lane.b32.xlu0 %v902, 126
      %v909 = vpop.permute.xlu0 %908
      %910 = vrot.lane.b32.xlu0 %v903, 126
      %v911 = vpop.permute.xlu0 %910
      %912 = vrot.lane.b32.xlu0 %v904, 126
      %v913 = vpop.permute.xlu0 %912
      %v914 = vsel %vm579, %v909, %v911
      %v915 = vsel %vm579, %v911, %v913
      %918 = vst [vmem:[#allocation3 + $0x20] sm:$0xff] %v914
      %919 = vst [vmem:[#allocation3 + $0x28] sm:$0xff] %v915
      %v920 = vld [vmem:[#allocation2] sm:$0xff]
      %v921 = vld [vmem:[#allocation2 + $0x8] sm:$0xff]
      %v922 = vld [vmem:[#allocation2 + $0x10] sm:$0xff]
      %v923 = vld [vmem:[%s2] ss:$2 sm:$0x3]
      %v925 = vperm.slane %v923, 0
      %v926 = vperm.slane %v923, 1
      %927 = vrot.lane.b32.xlu0 %v925, 16
      %v928 = vpop.permute.xlu0 %927
      %929 = vrot.lane.b32.xlu0 %v926, 16
      %v930 = vpop.permute.xlu0 %929
      %v931 = vsel %vm597, %v928, %v930
      %v935 = vmul.f32 %v920, %v928
      %v936 = vmul.f32 %v921, %v931
      %v937 = vmul.f32 %v922, %v930
      %941 = vrot.lane.b32.xlu0 %v935, 112
      %v942 = vpop.permute.xlu0 %941
      %943 = vrot.lane.b32.xlu0 %v936, 112
      %v944 = vpop.permute.xlu0 %943
      %945 = vrot.lane.b32.xlu0 %v937, 112
      %v946 = vpop.permute.xlu0 %945
      %v947 = vsel %vm617, %v942, %v944
      %v948 = vsel %vm617, %v944, %v946
      %951 = vst [vmem:[#allocation3 + $0x30] sm:$0xff] %v947
      %952 = vst [vmem:[#allocation3 + $0x38] sm:$0xff] %v948
      %v953 = vld [vmem:[#allocation2] sm:$0xff]
      %v954 = vld [vmem:[#allocation2 + $0x8] sm:$0xff]
      %v955 = vld [vmem:[#allocation2 + $0x10] sm:$0xff]
      %959 = vrot.lane.b32.xlu0 %v953, 111
      %v960 = vpop.permute.xlu0 %959
      %961 = vrot.lane.b32.xlu0 %v954, 111
      %v962 = vpop.permute.xlu0 %961
      %963 = vrot.lane.b32.xlu0 %v955, 111
      %v964 = vpop.permute.xlu0 %963
      %v965 = vsel %vm636, %v960, %v962
      %v966 = vsel %vm636, %v962, %v964
      %969 = vst [vmem:[#allocation3 + $0x40] sm:$0xff] %v965
      %970 = vst [vmem:[#allocation3 + $0x48] sm:$0xff] %v966
      %v971 = vld [vmem:[#allocation2] sm:$0xff]
      %v972 = vld [vmem:[#allocation2 + $0x8] sm:$0xff]
      %v973 = vld [vmem:[#allocation2 + $0x10] sm:$0xff]
      %v974 = vld [vmem:[%s553] ss:$2 sm:$0x3]
      %v976 = vperm.slane %v974, 0
      %v977 = vperm.slane %v974, 1
      %978 = vrot.lane.b32.xlu0 %v976, 18
      %v979 = vpop.permute.xlu0 %978
      %980 = vrot.lane.b32.xlu0 %v977, 18
      %v981 = vpop.permute.xlu0 %980
      %v982 = vsel %vm654, %v979, %v981
      %v986 = vmul.f32 %v971, %v979
      %v987 = vmul.f32 %v972, %v982
      %v988 = vmul.f32 %v973, %v981
      %992 = vrot.lane.b32.xlu0 %v986, 110
      %v993 = vpop.permute.xlu0 %992
      %994 = vrot.lane.b32.xlu0 %v987, 110
      %v995 = vpop.permute.xlu0 %994
      %996 = vrot.lane.b32.xlu0 %v988, 110
      %v997 = vpop.permute.xlu0 %996
      %v998 = vsel %vm674, %v993, %v995
      %v999 = vsel %vm674, %v995, %v997
      %1002 = vst [vmem:[#allocation3 + $0x50] sm:$0xff] %v998
      %1003 = vst [vmem:[#allocation3 + $0x58] sm:$0xff] %v999
      %v1004 = vld [vmem:[#allocation2] sm:$0xff]
      %v1005 = vld [vmem:[#allocation2 + $0x8] sm:$0xff]
      %v1006 = vld [vmem:[#allocation2 + $0x10] sm:$0xff]
      %v1007 = vld [vmem:[%s2] ss:$2 sm:$0x3]
      %v1009 = vperm.slane %v1007, 0
      %v1010 = vperm.slane %v1007, 1
      %1011 = vrot.lane.b32.xlu0 %v1009, 32
      %v1012 = vpop.permute.xlu0 %1011
      %1013 = vrot.lane.b32.xlu0 %v1010, 32
      %v1014 = vpop.permute.xlu0 %1013
      %v1015 = vsel %vm692, %v1012, %v1014
      %v1019 = vmul.f32 %v1004, %v1012
      %v1020 = vmul.f32 %v1005, %v1015
      %v1021 = vmul.f32 %v1006, %v1014
      %1025 = vrot.lane.b32.xlu0 %v1019, 96
      %v1026 = vpop.permute.xlu0 %1025
      %1027 = vrot.lane.b32.xlu0 %v1020, 96
      %v1028 = vpop.permute.xlu0 %1027
      %1029 = vrot.lane.b32.xlu0 %v1021, 96
      %v1030 = vpop.permute.xlu0 %1029
      %v1031 = vsel %vm709, %v1026, %v1028
      %v1032 = vsel %vm709, %v1028, %v1030
      %1035 = vst [vmem:[#allocation3 + $0x60] sm:$0xff] %v1031
      %1036 = vst [vmem:[#allocation3 + $0x68] sm:$0xff] %v1032
      %v1037 = vld [vmem:[#allocation2] sm:$0xff]
      %v1038 = vld [vmem:[#allocation2 + $0x8] sm:$0xff]
      %v1039 = vld [vmem:[#allocation2 + $0x10] sm:$0xff]
      %1043 = vrot.lane.b32.xlu0 %v1037, 95
      %v1044 = vpop.permute.xlu0 %1043
      %1045 = vrot.lane.b32.xlu0 %v1038, 95
      %v1046 = vpop.permute.xlu0 %1045
      %1047 = vrot.lane.b32.xlu0 %v1039, 95
      %v1048 = vpop.permute.xlu0 %1047
      %v1049 = vsel %vm731, %v1044, %v1046
      %v1050 = vsel %vm731, %v1046, %v1048
      %1053 = vst [vmem:[#allocation3 + $0x70] sm:$0xff] %v1049
      %1054 = vst [vmem:[#allocation3 + $0x78] sm:$0xff] %v1050
      %v1055 = vld [vmem:[#allocation2] sm:$0xff]
      %v1056 = vld [vmem:[#allocation2 + $0x8] sm:$0xff]
      %v1057 = vld [vmem:[#allocation2 + $0x10] sm:$0xff]
      %v1058 = vld [vmem:[%s553] ss:$2 sm:$0x3]
      %v1060 = vperm.slane %v1058, 0
      %v1061 = vperm.slane %v1058, 1
      %1062 = vrot.lane.b32.xlu0 %v1060, 34
      %v1063 = vpop.permute.xlu0 %1062
      %1064 = vrot.lane.b32.xlu0 %v1061, 34
      %v1065 = vpop.permute.xlu0 %1064
      %v1066 = vsel %vm749, %v1063, %v1065
      %v1070 = vmul.f32 %v1055, %v1063
      %v1071 = vmul.f32 %v1056, %v1066
      %v1072 = vmul.f32 %v1057, %v1065
      %1076 = vrot.lane.b32.xlu0 %v1070, 94
      %v1077 = vpop.permute.xlu0 %1076
      %1078 = vrot.lane.b32.xlu0 %v1071, 94
      %v1079 = vpop.permute.xlu0 %1078
      %1080 = vrot.lane.b32.xlu0 %v1072, 94
      %v1081 = vpop.permute.xlu0 %1080
      %v1082 = vsel %vm766, %v1077, %v1079
      %v1083 = vsel %vm766, %v1079, %v1081
      %1086 = vst [vmem:[#allocation3 + $0x80] sm:$0xff] %v1082
      %1087 = vst [vmem:[#allocation3 + $0x88] sm:$0xff] %v1083
      %v1088 = vld [vmem:[#allocation3] sm:$0xff]
      %v1089 = vld [vmem:[#allocation3 + $0x8] sm:$0xff]
      %v1090 = vld [vmem:[#allocation3 + $0x10] sm:$0xff]
      %v1091 = vld [vmem:[#allocation3 + $0x18] sm:$0xff]
      %v1092 = vld [vmem:[#allocation3 + $0x20] sm:$0xff]
      %v1093 = vld [vmem:[#allocation3 + $0x28] sm:$0xff]
      %v1094 = vld [vmem:[#allocation3 + $0x30] sm:$0xff]
      %v1095 = vld [vmem:[#allocation3 + $0x38] sm:$0xff]
      %v1096 = vld [vmem:[#allocation3 + $0x40] sm:$0xff]
      %v1097 = vld [vmem:[#allocation3 + $0x48] sm:$0xff]
      %v1098 = vld [vmem:[#allocation3 + $0x50] sm:$0xff]
      %v1099 = vld [vmem:[#allocation3 + $0x58] sm:$0xff]
      %v1100 = vld [vmem:[#allocation3 + $0x60] sm:$0xff]
      %v1101 = vld [vmem:[#allocation3 + $0x68] sm:$0xff]
      %v1102 = vld [vmem:[#allocation3 + $0x70] sm:$0xff]
      %v1103 = vld [vmem:[#allocation3 + $0x78] sm:$0xff]
      %v1104 = vld [vmem:[#allocation3 + $0x80] sm:$0xff]
      %v1105 = vld [vmem:[#allocation3 + $0x88] sm:$0xff]
      %v1106 = vmax.f32 %v1088, 0.0
      %v1107 = vmax.f32 %v1089, 0.0
      %v1108 = vmax.f32 %v1090, 0.0
      %v1109 = vmax.f32 %v1091, 0.0
      %v1110 = vmax.f32 %v1092, 0.0
      %v1111 = vmax.f32 %v1093, 0.0
      %v1112 = vmax.f32 %v1094, 0.0
      %v1113 = vmax.f32 %v1095, 0.0
      %v1114 = vmax.f32 %v1096, 0.0
      %v1115 = vmax.f32 %v1097, 0.0
      %v1116 = vmax.f32 %v1098, 0.0
      %v1117 = vmax.f32 %v1099, 0.0
      %v1118 = vmax.f32 %v1100, 0.0
      %v1119 = vmax.f32 %v1101, 0.0
      %v1120 = vmax.f32 %v1102, 0.0
      %v1121 = vmax.f32 %v1103, 0.0
      %v1122 = vmax.f32 %v1104, 0.0
      %v1123 = vmax.f32 %v1105, 0.0
      %v1124 = vld [vmem:[%s6] sm:$0xff]
      %v1125 = vld [vmem:[%s6 + $0x8] sm:$0xff]
      %v1126 = vld [vmem:[%s7] sm:$0xff]
      %v1127 = vld [vmem:[%s7 + $0x8] sm:$0xff]
      %1129 = vset.pattern.permute.xlu0 0
      %1130 = vperm.xlu0 %1129, %v1126
      %v1131 = vpop.permute.xlu0 %1130
      %1134 = vset.pattern.permute.xlu0 0
      %1135 = vperm.xlu0 %1134, %v1127
      %v1136 = vpop.permute.xlu0 %1135
      %vm1138 = vcmask 588800
      %v1140 = vsel %vm1138, %v1124, 0
      %v1143 = vsel %vm1138, %v1125, 0
      %1145 = vmatpush.msra.mxu0 0.0
      %1146 = vmatpush.msra.mxu0 0.0
      %1147 = vmatpush.msra.mxu0 0.0
      %1148 = vmatpush.msra.mxu0 0.0
      %1149 = vmatpush.msra.mxu0 0.0
      %1150 = vmatpush.msra.mxu0 0.0
      %1151 = vmatpush.msra.mxu0 0.0
      %1152 = vmatpush.msra.mxu0 %v1122
      %1153 = vmatpush.msra.mxu0 %v1120
      %1154 = vmatpush.msra.mxu0 %v1118
      %1155 = vmatpush.msra.mxu0 %v1116
      %1156 = vmatpush.msra.mxu0 %v1114
      %1157 = vmatpush.msra.mxu0 %v1112
      %1158 = vmatpush.msra.mxu0 %v1110
      %1159 = vmatpush.msra.mxu0 %v1108
      %1160 = vmatpush.msra.mxu0 %v1106
      %1161 = vmatmul.f32.gmra.mxu0 %v1140
      %v1162 = vpop.f32.mrf.mxu0
      %v1163 = vadd.f32 %v1131, %v1162
      %1164 = vmatmul.f32.gmra.mxu0 %v1143
      %v1165 = vpop.f32.mrf.mxu0
      %v1166 = vadd.f32 %v1136, %v1165
      %1167 = vdwg.mxu0
      %1168 = vmatpush.msra.mxu0 0.0
      %1169 = vmatpush.msra.mxu0 0.0
      %1170 = vmatpush.msra.mxu0 0.0
      %1171 = vmatpush.msra.mxu0 0.0
      %1172 = vmatpush.msra.mxu0 0.0
      %1173 = vmatpush.msra.mxu0 0.0
      %1174 = vmatpush.msra.mxu0 0.0
      %1175 = vmatpush.msra.mxu0 %v1123
      %1176 = vmatpush.msra.mxu0 %v1121
      %1177 = vmatpush.msra.mxu0 %v1119
      %1178 = vmatpush.msra.mxu0 %v1117
      %1179 = vmatpush.msra.mxu0 %v1115
      %1180 = vmatpush.msra.mxu0 %v1113
      %1181 = vmatpush.msra.mxu0 %v1111
      %1182 = vmatpush.msra.mxu0 %v1109
      %1183 = vmatpush.msra.mxu0 %v1107
      %1184 = vmatmul.f32.gmra.mxu0 %v1140
      %v1185 = vpop.f32.mrf.mxu0
      %v1186 = vadd.f32 %v1131, %v1185
      %1187 = vmatmul.f32.gmra.mxu0 %v1143
      %v1188 = vpop.f32.mrf.mxu0
      %v1189 = vadd.f32 %v1136, %v1188
      %1190 = vdwg.mxu0
      %v1191 = vld [vmem:[%s10] sm:$0xff]
      %v1192 = vld [vmem:[%s10 + $0x8] sm:$0xff]
      %v1193 = vld [vmem:[%s11] sm:$0xff]
      %v1194 = vld [vmem:[%s11 + $0x8] sm:$0xff]
      %1196 = vset.pattern.permute.xlu0 0
      %1197 = vperm.xlu0 %1196, %v1193
      %v1198 = vpop.permute.xlu0 %1197
      %1201 = vset.pattern.permute.xlu0 0
      %1202 = vperm.xlu0 %1201, %v1194
      %v1203 = vpop.permute.xlu0 %1202
      %v1206 = vsel %vm1138, %v1191, 0
      %v1209 = vsel %vm1138, %v1192, 0
      %1211 = vmatpush.msra.mxu0 0.0
      %1212 = vmatpush.msra.mxu0 0.0
      %1213 = vmatpush.msra.mxu0 0.0
      %1214 = vmatpush.msra.mxu0 0.0
      %1215 = vmatpush.msra.mxu0 0.0
      %1216 = vmatpush.msra.mxu0 0.0
      %1217 = vmatpush.msra.mxu0 0.0
      %1218 = vmatpush.msra.mxu0 %v1104
      %1219 = vmatpush.msra.mxu0 %v1102
      %1220 = vmatpush.msra.mxu0 %v1100
      %1221 = vmatpush.msra.mxu0 %v1098
      %1222 = vmatpush.msra.mxu0 %v1096
      %1223 = vmatpush.msra.mxu0 %v1094
      %1224 = vmatpush.msra.mxu0 %v1092
      %1225 = vmatpush.msra.mxu0 %v1090
      %1226 = vmatpush.msra.mxu0 %v1088
      %1227 = vmatmul.f32.gmra.mxu0 %v1206
      %v1228 = vpop.f32.mrf.mxu0
      %v1229 = vadd.f32 %v1198, %v1228
      %1230 = vmatmul.f32.gmra.mxu0 %v1209
      %v1231 = vpop.f32.mrf.mxu0
      %v1232 = vadd.f32 %v1203, %v1231
      %1233 = vdwg.mxu0
      %1234 = vmatpush.msra.mxu0 0.0
      %1235 = vmatpush.msra.mxu0 0.0
      %1236 = vmatpush.msra.mxu0 0.0
      %1237 = vmatpush.msra.mxu0 0.0
      %1238 = vmatpush.msra.mxu0 0.0
      %1239 = vmatpush.msra.mxu0 0.0
      %1240 = vmatpush.msra.mxu0 0.0
      %1241 = vmatpush.msra.mxu0 %v1105
      %1242 = vmatpush.msra.mxu0 %v1103
      %1243 = vmatpush.msra.mxu0 %v1101
      %1244 = vmatpush.msra.mxu0 %v1099
      %1245 = vmatpush.msra.mxu0 %v1097
      %1246 = vmatpush.msra.mxu0 %v1095
      %1247 = vmatpush.msra.mxu0 %v1093
      %1248 = vmatpush.msra.mxu0 %v1091
      %1249 = vmatpush.msra.mxu0 %v1089
      %1250 = vmatmul.f32.gmra.mxu0 %v1206
      %v1251 = vpop.f32.mrf.mxu0
      %v1252 = vadd.f32 %v1198, %v1251
      %1253 = vmatmul.f32.gmra.mxu0 %v1209
      %v1254 = vpop.f32.mrf.mxu0
      %v1255 = vadd.f32 %v1203, %v1254
      %1256 = vdwg.mxu0
      %v1257 = vmax.f32 %v1163, 0.0
      %v1258 = vmax.f32 %v1186, 0.0
      %v1259 = vmax.f32 %v1166, 0.0
      %v1260 = vmax.f32 %v1189, 0.0
      %1265 = vrot.lane.b32.xlu0 %v1257, 17
      %v1266 = vpop.permute.xlu0 %1265
      %1267 = vrot.lane.b32.xlu0 %v1258, 17
      %v1268 = vpop.permute.xlu0 %1267
      %1269 = vrot.lane.b32.xlu0 %v1259, 17
      %v1270 = vpop.permute.xlu0 %1269
      %1271 = vrot.lane.b32.xlu0 %v1260, 17
      %v1272 = vpop.permute.xlu0 %1271
      %v1273 = vsel %vm431, %v1266, %v1268
      %v1274 = vsel %vm431, %v1270, %v1272
      %1281 = vst.msk [vmem:[#allocation2] sm:$0xff] %vm853, %v1266
      %1282 = vst [vmem:[#allocation2 + $0x8] sm:$0xff] %v1273
      %1283 = vst.msk [vmem:[#allocation2 + $0x10] sm:$0xff] %vm431, %v1268
      %1284 = vst.msk [vmem:[#allocation2 + $0x18] sm:$0xff] %vm853, %v1270
      %1285 = vst [vmem:[#allocation2 + $0x20] sm:$0xff] %v1274
      %1286 = vst.msk [vmem:[#allocation2 + $0x28] sm:$0xff] %vm431, %v1272
      %v1287 = vld [vmem:[#allocation2] sm:$0xff]
      %v1288 = vld [vmem:[#allocation2 + $0x8] sm:$0xff]
      %v1289 = vld [vmem:[#allocation2 + $0x18] sm:$0xff]
      %v1290 = vld [vmem:[#allocation2 + $0x20] sm:$0xff]
      %v1291 = vld [vmem:[%s2] ss:$2 sm:$0x3]
      %v1293 = vperm.slane %v1291, 0
      %v1294 = vperm.slane %v1291, 1
      %v1297 = vmul.f32 %v1287, %v1293
      %v1298 = vmul.f32 %v1288, %v1294
      %v1299 = vmul.f32 %v1289, %v1293
      %v1300 = vmul.f32 %v1290, %v1294
      %1301 = vst [vmem:[#allocation3] sm:$0xff] %v1297
      %1302 = vst [vmem:[#allocation3 + $0x8] sm:$0xff] %v1298
      %1303 = vst [vmem:[#allocation3 + $0x10] sm:$0xff] %v1299
      %1304 = vst [vmem:[#allocation3 + $0x18] sm:$0xff] %v1300
      %v1305 = vld [vmem:[#allocation2] sm:$0xff]
      %v1306 = vld [vmem:[#allocation2 + $0x8] sm:$0xff]
      %v1307 = vld [vmem:[#allocation2 + $0x10] sm:$0xff]
      %v1308 = vld [vmem:[#allocation2 + $0x18] sm:$0xff]
      %v1309 = vld [vmem:[#allocation2 + $0x20] sm:$0xff]
      %v1310 = vld [vmem:[#allocation2 + $0x28] sm:$0xff]
      %1317 = vrot.lane.b32.xlu0 %v1305, 127
      %v1318 = vpop.permute.xlu0 %1317
      %1319 = vrot.lane.b32.xlu0 %v1306, 127
      %v1320 = vpop.permute.xlu0 %1319
      %1321 = vrot.lane.b32.xlu0 %v1307, 127
      %v1322 = vpop.permute.xlu0 %1321
      %1323 = vrot.lane.b32.xlu0 %v1308, 127
      %v1324 = vpop.permute.xlu0 %1323
      %1325 = vrot.lane.b32.xlu0 %v1309, 127
      %v1326 = vpop.permute.xlu0 %1325
      %1327 = vrot.lane.b32.xlu0 %v1310, 127
      %v1328 = vpop.permute.xlu0 %1327
      %v1329 = vsel %vm543, %v1318, %v1320
      %v1330 = vsel %vm543, %v1320, %v1322
      %v1331 = vsel %vm543, %v1324, %v1326
      %v1332 = vsel %vm543, %v1326, %v1328
      %1337 = vst [vmem:[#allocation3 + $0x20] sm:$0xff] %v1329
      %1338 = vst [vmem:[#allocation3 + $0x28] sm:$0xff] %v1330
      %1339 = vst [vmem:[#allocation3 + $0x30] sm:$0xff] %v1331
      %1340 = vst [vmem:[#allocation3 + $0x38] sm:$0xff] %v1332
      %v1341 = vld [vmem:[#allocation2] sm:$0xff]
      %v1342 = vld [vmem:[#allocation2 + $0x8] sm:$0xff]
      %v1343 = vld [vmem:[#allocation2 + $0x10] sm:$0xff]
      %v1344 = vld [vmem:[#allocation2 + $0x18] sm:$0xff]
      %v1345 = vld [vmem:[#allocation2 + $0x20] sm:$0xff]
      %v1346 = vld [vmem:[#allocation2 + $0x28] sm:$0xff]
      %v1347 = vld [vmem:[%s553] ss:$2 sm:$0x3]
      %v1349 = vperm.slane %v1347, 0
      %v1350 = vperm.slane %v1347, 1
      %1351 = vrot.lane.b32.xlu0 %v1349, 2
      %v1352 = vpop.permute.xlu0 %1351
      %1353 = vrot.lane.b32.xlu0 %v1350, 2
      %v1354 = vpop.permute.xlu0 %1353
      %v1355 = vsel %vm562, %v1352, %v1354
      %v1359 = vmul.f32 %v1341, %v1352
      %v1360 = vmul.f32 %v1342, %v1355
      %v1361 = vmul.f32 %v1343, %v1354
      %v1362 = vmul.f32 %v1344, %v1352
      %v1363 = vmul.f32 %v1345, %v1355
      %v1364 = vmul.f32 %v1346, %v1354
      %1371 = vrot.lane.b32.xlu0 %v1359, 126
      %v1372 = vpop.permute.xlu0 %1371
      %1373 = vrot.lane.b32.xlu0 %v1360, 126
      %v1374 = vpop.permute.xlu0 %1373
      %1375 = vrot.lane.b32.xlu0 %v1361, 126
      %v1376 = vpop.permute.xlu0 %1375
      %1377 = vrot.lane.b32.xlu0 %v1362, 126
      %v1378 = vpop.permute.xlu0 %1377
      %1379 = vrot.lane.b32.xlu0 %v1363, 126
      %v1380 = vpop.permute.xlu0 %1379
      %1381 = vrot.lane.b32.xlu0 %v1364, 126
      %v1382 = vpop.permute.xlu0 %1381
      %v1383 = vsel %vm579, %v1372, %v1374
      %v1384 = vsel %vm579, %v1374, %v1376
      %v1385 = vsel %vm579, %v1378, %v1380
      %v1386 = vsel %vm579, %v1380, %v1382
      %1391 = vst [vmem:[#allocation3 + $0x40] sm:$0xff] %v1383
      %1392 = vst [vmem:[#allocation3 + $0x48] sm:$0xff] %v1384
      %1393 = vst [vmem:[#allocation3 + $0x50] sm:$0xff] %v1385
      %1394 = vst [vmem:[#allocation3 + $0x58] sm:$0xff] %v1386
      %v1395 = vld [vmem:[#allocation2] sm:$0xff]
      %v1396 = vld [vmem:[#allocation2 + $0x8] sm:$0xff]
      %v1397 = vld [vmem:[#allocation2 + $0x10] sm:$0xff]
      %v1398 = vld [vmem:[#allocation2 + $0x18] sm:$0xff]
      %v1399 = vld [vmem:[#allocation2 + $0x20] sm:$0xff]
      %v1400 = vld [vmem:[#allocation2 + $0x28] sm:$0xff]
      %v1401 = vld [vmem:[%s2] ss:$2 sm:$0x3]
      %v1403 = vperm.slane %v1401, 0
      %v1404 = vperm.slane %v1401, 1
      %1405 = vrot.lane.b32.xlu0 %v1403, 16
      %v1406 = vpop.permute.xlu0 %1405
      %1407 = vrot.lane.b32.xlu0 %v1404, 16
      %v1408 = vpop.permute.xlu0 %1407
      %v1409 = vsel %vm597, %v1406, %v1408
      %v1413 = vmul.f32 %v1395, %v1406
      %v1414 = vmul.f32 %v1396, %v1409
      %v1415 = vmul.f32 %v1397, %v1408
      %v1416 = vmul.f32 %v1398, %v1406
      %v1417 = vmul.f32 %v1399, %v1409
      %v1418 = vmul.f32 %v1400, %v1408
      %1425 = vrot.lane.b32.xlu0 %v1413, 112
      %v1426 = vpop.permute.xlu0 %1425
      %1427 = vrot.lane.b32.xlu0 %v1414, 112
      %v1428 = vpop.permute.xlu0 %1427
      %1429 = vrot.lane.b32.xlu0 %v1415, 112
      %v1430 = vpop.permute.xlu0 %1429
      %1431 = vrot.lane.b32.xlu0 %v1416, 112
      %v1432 = vpop.permute.xlu0 %1431
      %1433 = vrot.lane.b32.xlu0 %v1417, 112
      %v1434 = vpop.permute.xlu0 %1433
      %1435 = vrot.lane.b32.xlu0 %v1418, 112
      %v1436 = vpop.permute.xlu0 %1435
      %v1437 = vsel %vm617, %v1426, %v1428
      %v1438 = vsel %vm617, %v1428, %v1430
      %v1439 = vsel %vm617, %v1432, %v1434
      %v1440 = vsel %vm617, %v1434, %v1436
      %1445 = vst [vmem:[#allocation3 + $0x60] sm:$0xff] %v1437
      %1446 = vst [vmem:[#allocation3 + $0x68] sm:$0xff] %v1438
      %1447 = vst [vmem:[#allocation3 + $0x70] sm:$0xff] %v1439
      %1448 = vst [vmem:[#allocation3 + $0x78] sm:$0xff] %v1440
      %v1449 = vld [vmem:[#allocation2] sm:$0xff]
      %v1450 = vld [vmem:[#allocation2 + $0x8] sm:$0xff]
      %v1451 = vld [vmem:[#allocation2 + $0x10] sm:$0xff]
      %v1452 = vld [vmem:[#allocation2 + $0x18] sm:$0xff]
      %v1453 = vld [vmem:[#allocation2 + $0x20] sm:$0xff]
      %v1454 = vld [vmem:[#allocation2 + $0x28] sm:$0xff]
      %1461 = vrot.lane.b32.xlu0 %v1449, 111
      %v1462 = vpop.permute.xlu0 %1461
      %1463 = vrot.lane.b32.xlu0 %v1450, 111
      %v1464 = vpop.permute.xlu0 %1463
      %1465 = vrot.lane.b32.xlu0 %v1451, 111
      %v1466 = vpop.permute.xlu0 %1465
      %1467 = vrot.lane.b32.xlu0 %v1452, 111
      %v1468 = vpop.permute.xlu0 %1467
      %1469 = vrot.lane.b32.xlu0 %v1453, 111
      %v1470 = vpop.permute.xlu0 %1469
      %1471 = vrot.lane.b32.xlu0 %v1454, 111
      %v1472 = vpop.permute.xlu0 %1471
      %v1473 = vsel %vm636, %v1462, %v1464
      %v1474 = vsel %vm636, %v1464, %v1466
      %v1475 = vsel %vm636, %v1468, %v1470
      %v1476 = vsel %vm636, %v1470, %v1472
      %1481 = vst [vmem:[#allocation3 + $0x80] sm:$0xff] %v1473
      %1482 = vst [vmem:[#allocation3 + $0x88] sm:$0xff] %v1474
      %1483 = vst [vmem:[#allocation3 + $0x90] sm:$0xff] %v1475
      %1484 = vst [vmem:[#allocation3 + $0x98] sm:$0xff] %v1476
      %v1485 = vld [vmem:[#allocation2] sm:$0xff]
      %v1486 = vld [vmem:[#allocation2 + $0x8] sm:$0xff]
      %v1487 = vld [vmem:[#allocation2 + $0x10] sm:$0xff]
      %v1488 = vld [vmem:[#allocation2 + $0x18] sm:$0xff]
      %v1489 = vld [vmem:[#allocation2 + $0x20] sm:$0xff]
      %v1490 = vld [vmem:[#allocation2 + $0x28] sm:$0xff]
      %v1491 = vld [vmem:[%s553] ss:$2 sm:$0x3]
      %v1493 = vperm.slane %v1491, 0
      %v1494 = vperm.slane %v1491, 1
      %1495 = vrot.lane.b32.xlu0 %v1493, 18
      %v1496 = vpop.permute.xlu0 %1495
      %1497 = vrot.lane.b32.xlu0 %v1494, 18
      %v1498 = vpop.permute.xlu0 %1497
      %v1499 = vsel %vm654, %v1496, %v1498
      %v1503 = vmul.f32 %v1485, %v1496
      %v1504 = vmul.f32 %v1486, %v1499
      %v1505 = vmul.f32 %v1487, %v1498
      %v1506 = vmul.f32 %v1488, %v1496
      %v1507 = vmul.f32 %v1489, %v1499
      %v1508 = vmul.f32 %v1490, %v1498
      %1515 = vrot.lane.b32.xlu0 %v1503, 110
      %v1516 = vpop.permute.xlu0 %1515
      %1517 = vrot.lane.b32.xlu0 %v1504, 110
      %v1518 = vpop.permute.xlu0 %1517
      %1519 = vrot.lane.b32.xlu0 %v1505, 110
      %v1520 = vpop.permute.xlu0 %1519
      %1521 = vrot.lane.b32.xlu0 %v1506, 110
      %v1522 = vpop.permute.xlu0 %1521
      %1523 = vrot.lane.b32.xlu0 %v1507, 110
      %v1524 = vpop.permute.xlu0 %1523
      %1525 = vrot.lane.b32.xlu0 %v1508, 110
      %v1526 = vpop.permute.xlu0 %1525
      %v1527 = vsel %vm674, %v1516, %v1518
      %v1528 = vsel %vm674, %v1518, %v1520
      %v1529 = vsel %vm674, %v1522, %v1524
      %v1530 = vsel %vm674, %v1524, %v1526
      %1535 = vst [vmem:[#allocation3 + $0xa0] sm:$0xff] %v1527
      %1536 = vst [vmem:[#allocation3 + $0xa8] sm:$0xff] %v1528
      %1537 = vst [vmem:[#allocation3 + $0xb0] sm:$0xff] %v1529
      %1538 = vst [vmem:[#allocation3 + $0xb8] sm:$0xff] %v1530
      %v1539 = vld [vmem:[#allocation2] sm:$0xff]
      %v1540 = vld [vmem:[#allocation2 + $0x8] sm:$0xff]
      %v1541 = vld [vmem:[#allocation2 + $0x10] sm:$0xff]
      %v1542 = vld [vmem:[#allocation2 + $0x18] sm:$0xff]
      %v1543 = vld [vmem:[#allocation2 + $0x20] sm:$0xff]
      %v1544 = vld [vmem:[#allocation2 + $0x28] sm:$0xff]
      %v1545 = vld [vmem:[%s2] ss:$2 sm:$0x3]
      %v1547 = vperm.slane %v1545, 0
      %v1548 = vperm.slane %v1545, 1
      %1549 = vrot.lane.b32.xlu0 %v1547, 32
      %v1550 = vpop.permute.xlu0 %1549
      %1551 = vrot.lane.b32.xlu0 %v1548, 32
      %v1552 = vpop.permute.xlu0 %1551
      %v1553 = vsel %vm692, %v1550, %v1552
      %v1557 = vmul.f32 %v1539, %v1550
      %v1558 = vmul.f32 %v1540, %v1553
      %v1559 = vmul.f32 %v1541, %v1552
      %v1560 = vmul.f32 %v1542, %v1550
      %v1561 = vmul.f32 %v1543, %v1553
      %v1562 = vmul.f32 %v1544, %v1552
      %1569 = vrot.lane.b32.xlu0 %v1557, 96
      %v1570 = vpop.permute.xlu0 %1569
      %1571 = vrot.lane.b32.xlu0 %v1558, 96
      %v1572 = vpop.permute.xlu0 %1571
      %1573 = vrot.lane.b32.xlu0 %v1559, 96
      %v1574 = vpop.permute.xlu0 %1573
      %1575 = vrot.lane.b32.xlu0 %v1560, 96
      %v1576 = vpop.permute.xlu0 %1575
      %1577 = vrot.lane.b32.xlu0 %v1561, 96
      %v1578 = vpop.permute.xlu0 %1577
      %1579 = vrot.lane.b32.xlu0 %v1562, 96
      %v1580 = vpop.permute.xlu0 %1579
      %v1581 = vsel %vm709, %v1570, %v1572
      %v1582 = vsel %vm709, %v1572, %v1574
      %v1583 = vsel %vm709, %v1576, %v1578
      %v1584 = vsel %vm709, %v1578, %v1580
      %1589 = vst [vmem:[#allocation3 + $0xc0] sm:$0xff] %v1581
      %1590 = vst [vmem:[#allocation3 + $0xc8] sm:$0xff] %v1582
      %1591 = vst [vmem:[#allocation3 + $0xd0] sm:$0xff] %v1583
      %1592 = vst [vmem:[#allocation3 + $0xd8] sm:$0xff] %v1584
      %v1593 = vld [vmem:[#allocation2] sm:$0xff]
      %v1594 = vld [vmem:[#allocation2 + $0x8] sm:$0xff]
      %v1595 = vld [vmem:[#allocation2 + $0x10] sm:$0xff]
      %v1596 = vld [vmem:[#allocation2 + $0x18] sm:$0xff]
      %v1597 = vld [vmem:[#allocation2 + $0x20] sm:$0xff]
      %v1598 = vld [vmem:[#allocation2 + $0x28] sm:$0xff]
      %1605 = vrot.lane.b32.xlu0 %v1593, 95
      %v1606 = vpop.permute.xlu0 %1605
      %1607 = vrot.lane.b32.xlu0 %v1594, 95
      %v1608 = vpop.permute.xlu0 %1607
      %1609 = vrot.lane.b32.xlu0 %v1595, 95
      %v1610 = vpop.permute.xlu0 %1609
      %1611 = vrot.lane.b32.xlu0 %v1596, 95
      %v1612 = vpop.permute.xlu0 %1611
      %1613 = vrot.lane.b32.xlu0 %v1597, 95
      %v1614 = vpop.permute.xlu0 %1613
      %1615 = vrot.lane.b32.xlu0 %v1598, 95
      %v1616 = vpop.permute.xlu0 %1615
      %v1617 = vsel %vm731, %v1606, %v1608
      %v1618 = vsel %vm731, %v1608, %v1610
      %v1619 = vsel %vm731, %v1612, %v1614
      %v1620 = vsel %vm731, %v1614, %v1616
      %1625 = vst [vmem:[#allocation3 + $0xe0] sm:$0xff] %v1617
      %1626 = vst [vmem:[#allocation3 + $0xe8] sm:$0xff] %v1618
      %1627 = vst [vmem:[#allocation3 + $0xf0] sm:$0xff] %v1619
      %1628 = vst [vmem:[#allocation3 + $0xf8] sm:$0xff] %v1620
      %v1629 = vld [vmem:[#allocation2] sm:$0xff]
      %v1630 = vld [vmem:[#allocation2 + $0x8] sm:$0xff]
      %v1631 = vld [vmem:[#allocation2 + $0x10] sm:$0xff]
      %v1632 = vld [vmem:[#allocation2 + $0x18] sm:$0xff]
      %v1633 = vld [vmem:[#allocation2 + $0x20] sm:$0xff]
      %v1634 = vld [vmem:[#allocation2 + $0x28] sm:$0xff]
      %v1635 = vld [vmem:[%s553] ss:$2 sm:$0x3]
      %v1637 = vperm.slane %v1635, 0
      %v1638 = vperm.slane %v1635, 1
      %1639 = vrot.lane.b32.xlu0 %v1637, 34
      %v1640 = vpop.permute.xlu0 %1639
      %1641 = vrot.lane.b32.xlu0 %v1638, 34
      %v1642 = vpop.permute.xlu0 %1641
      %v1643 = vsel %vm749, %v1640, %v1642
      %v1647 = vmul.f32 %v1629, %v1640
      %v1648 = vmul.f32 %v1630, %v1643
      %v1649 = vmul.f32 %v1631, %v1642
      %v1650 = vmul.f32 %v1632, %v1640
      %v1651 = vmul.f32 %v1633, %v1643
      %v1652 = vmul.f32 %v1634, %v1642
      %1659 = vrot.lane.b32.xlu0 %v1647, 94
      %v1660 = vpop.permute.xlu0 %1659
      %1661 = vrot.lane.b32.xlu0 %v1648, 94
      %v1662 = vpop.permute.xlu0 %1661
      %1663 = vrot.lane.b32.xlu0 %v1649, 94
      %v1664 = vpop.permute.xlu0 %1663
      %1665 = vrot.lane.b32.xlu0 %v1650, 94
      %v1666 = vpop.permute.xlu0 %1665
      %1667 = vrot.lane.b32.xlu0 %v1651, 94
      %v1668 = vpop.permute.xlu0 %1667
      %1669 = vrot.lane.b32.xlu0 %v1652, 94
      %v1670 = vpop.permute.xlu0 %1669
      %v1671 = vsel %vm766, %v1660, %v1662
      %v1672 = vsel %vm766, %v1662, %v1664
      %v1673 = vsel %vm766, %v1666, %v1668
      %v1674 = vsel %vm766, %v1668, %v1670
      %1679 = vst [vmem:[#allocation3 + $0x100] sm:$0xff] %v1671
      %1680 = vst [vmem:[#allocation3 + $0x108] sm:$0xff] %v1672
      %1681 = vst [vmem:[#allocation3 + $0x110] sm:$0xff] %v1673
      %1682 = vst [vmem:[#allocation3 + $0x118] sm:$0xff] %v1674
      %v1683 = vld [vmem:[#allocation3] sm:$0xff]
      %v1684 = vld [vmem:[#allocation3 + $0x8] sm:$0xff]
      %v1685 = vld [vmem:[#allocation3 + $0x10] sm:$0xff]
      %v1686 = vld [vmem:[#allocation3 + $0x18] sm:$0xff]
      %v1687 = vld [vmem:[#allocation3 + $0x20] sm:$0xff]
      %v1688 = vld [vmem:[#allocation3 + $0x28] sm:$0xff]
      %v1689 = vld [vmem:[#allocation3 + $0x30] sm:$0xff]
      %v1690 = vld [vmem:[#allocation3 + $0x38] sm:$0xff]
      %v1691 = vld [vmem:[#allocation3 + $0x40] sm:$0xff]
      %v1692 = vld [vmem:[#allocation3 + $0x48] sm:$0xff]
      %v1693 = vld [vmem:[#allocation3 + $0x50] sm:$0xff]
      %v1694 = vld [vmem:[#allocation3 + $0x58] sm:$0xff]
      %v1695 = vld [vmem:[#allocation3 + $0x60] sm:$0xff]
      %v1696 = vld [vmem:[#allocation3 + $0x68] sm:$0xff]
      %v1697 = vld [vmem:[#allocation3 + $0x70] sm:$0xff]
      %v1698 = vld [vmem:[#allocation3 + $0x78] sm:$0xff]
      %v1699 = vld [vmem:[#allocation3 + $0x80] sm:$0xff]
      %v1700 = vld [vmem:[#allocation3 + $0x88] sm:$0xff]
      %v1701 = vld [vmem:[#allocation3 + $0x90] sm:$0xff]
      %v1702 = vld [vmem:[#allocation3 + $0x98] sm:$0xff]
      %v1703 = vld [vmem:[#allocation3 + $0xa0] sm:$0xff]
      %v1704 = vld [vmem:[#allocation3 + $0xa8] sm:$0xff]
      %v1705 = vld [vmem:[#allocation3 + $0xb0] sm:$0xff]
      %v1706 = vld [vmem:[#allocation3 + $0xb8] sm:$0xff]
      %v1707 = vld [vmem:[#allocation3 + $0xc0] sm:$0xff]
      %v1708 = vld [vmem:[#allocation3 + $0xc8] sm:$0xff]
      %v1709 = vld [vmem:[#allocation3 + $0xd0] sm:$0xff]
      %v1710 = vld [vmem:[#allocation3 + $0xd8] sm:$0xff]
      %v1711 = vld [vmem:[#allocation3 + $0xe0] sm:$0xff]
      %v1712 = vld [vmem:[#allocation3 + $0xe8] sm:$0xff]
      %v1713 = vld [vmem:[#allocation3 + $0xf0] sm:$0xff]
      %v1714 = vld [vmem:[#allocation3 + $0xf8] sm:$0xff]
      %v1715 = vld [vmem:[#allocation3 + $0x100] sm:$0xff]
      %v1716 = vld [vmem:[#allocation3 + $0x108] sm:$0xff]
      %v1717 = vld [vmem:[#allocation3 + $0x110] sm:$0xff]
      %v1718 = vld [vmem:[#allocation3 + $0x118] sm:$0xff]
      %v1719 = vld [vmem:[%s8] sm:$0xff]
      %v1720 = vld [vmem:[%s8 + $0x8] sm:$0xff]
      %v1721 = vld [vmem:[%s8 + $0x10] sm:$0xff]
      %v1722 = vld [vmem:[%s8 + $0x18] sm:$0xff]
      %v1723 = vld [vmem:[%s9] sm:$0xff]
      %v1724 = vld [vmem:[%s9 + $0x8] sm:$0xff]
      %1726 = vset.pattern.permute.xlu0 0
      %1727 = vperm.xlu0 %1726, %v1723
      %v1728 = vpop.permute.xlu0 %1727
      %1731 = vset.pattern.permute.xlu0 0
      %1732 = vperm.xlu0 %1731, %v1724
      %v1733 = vpop.permute.xlu0 %1732
      %v1736 = vsel %vm597, %v1720, 0
      %v1739 = vsel %vm597, %v1722, 0
      %1741 = vmatpush.msra.mxu0 %v1713
      %1742 = vmatpush.msra.mxu0 %v1711
      %1743 = vmatpush.msra.mxu0 %v1709
      %1744 = vmatpush.msra.mxu0 %v1707
      %1745 = vmatpush.msra.mxu0 %v1705
      %1746 = vmatpush.msra.mxu0 %v1703
      %1747 = vmatpush.msra.mxu0 %v1701
      %1748 = vmatpush.msra.mxu0 %v1699
      %1749 = vmatpush.msra.mxu0 %v1697
      %1750 = vmatpush.msra.mxu0 %v1695
      %1751 = vmatpush.msra.mxu0 %v1693
      %1752 = vmatpush.msra.mxu0 %v1691
      %1753 = vmatpush.msra.mxu0 %v1689
      %1754 = vmatpush.msra.mxu0 %v1687
      %1755 = vmatpush.msra.mxu0 %v1685
      %1756 = vmatpush.msra.mxu0 %v1683
      %1757 = vmatmul.f32.gmra.mxu0 %v1719
      %v1758 = vpop.f32.mrf.mxu0
      %v1759 = vadd.f32 %v1728, %v1758
      %1760 = vmatmul.f32.gmra.mxu0 %v1721
      %v1761 = vpop.f32.mrf.mxu0
      %v1762 = vadd.f32 %v1733, %v1761
      %1763 = vdwg.mxu0
      %1764 = vmatpush.msra.mxu0 0.0
      %1765 = vmatpush.msra.mxu0 0.0
      %1766 = vmatpush.msra.mxu0 0.0
      %1767 = vmatpush.msra.mxu0 0.0
      %1768 = vmatpush.msra.mxu0 0.0
      %1769 = vmatpush.msra.mxu0 0.0
      %1770 = vmatpush.msra.mxu0 0.0
      %1771 = vmatpush.msra.mxu0 0.0
      %1772 = vmatpush.msra.mxu0 0.0
      %1773 = vmatpush.msra.mxu0 0.0
      %1774 = vmatpush.msra.mxu0 0.0
      %1775 = vmatpush.msra.mxu0 0.0
      %1776 = vmatpush.msra.mxu0 0.0
      %1777 = vmatpush.msra.mxu0 0.0
      %1778 = vmatpush.msra.mxu0 %v1717
      %1779 = vmatpush.msra.mxu0 %v1715
      %1780 = vmatmul.f32.gmra.mxu0 %v1736
      %v1781 = vpop.f32.mrf.mxu0
      %v1782 = vadd.f32 %v1759, %v1781
      %1783 = vmatmul.f32.gmra.mxu0 %v1739
      %v1784 = vpop.f32.mrf.mxu0
      %v1785 = vadd.f32 %v1762, %v1784
      %1786 = vdwg.mxu0
      %1787 = vmatpush.msra.mxu0 %v1714
      %1788 = vmatpush.msra.mxu0 %v1712
      %1789 = vmatpush.msra.mxu0 %v1710
      %1790 = vmatpush.msra.mxu0 %v1708
      %1791 = vmatpush.msra.mxu0 %v1706
      %1792 = vmatpush.msra.mxu0 %v1704
      %1793 = vmatpush.msra.mxu0 %v1702
      %1794 = vmatpush.msra.mxu0 %v1700
      %1795 = vmatpush.msra.mxu0 %v1698
      %1796 = vmatpush.msra.mxu0 %v1696
      %1797 = vmatpush.msra.mxu0 %v1694
      %1798 = vmatpush.msra.mxu0 %v1692
      %1799 = vmatpush.msra.mxu0 %v1690
      %1800 = vmatpush.msra.mxu0 %v1688
      %1801 = vmatpush.msra.mxu0 %v1686
      %1802 = vmatpush.msra.mxu0 %v1684
      %1803 = vmatmul.f32.gmra.mxu0 %v1719
      %v1804 = vpop.f32.mrf.mxu0
      %v1805 = vadd.f32 %v1728, %v1804
      %1806 = vmatmul.f32.gmra.mxu0 %v1721
      %v1807 = vpop.f32.mrf.mxu0
      %v1808 = vadd.f32 %v1733, %v1807
      %1809 = vdwg.mxu0
      %1810 = vmatpush.msra.mxu0 0.0
      %1811 = vmatpush.msra.mxu0 0.0
      %1812 = vmatpush.msra.mxu0 0.0
      %1813 = vmatpush.msra.mxu0 0.0
      %1814 = vmatpush.msra.mxu0 0.0
      %1815 = vmatpush.msra.mxu0 0.0
      %1816 = vmatpush.msra.mxu0 0.0
      %1817 = vmatpush.msra.mxu0 0.0
      %1818 = vmatpush.msra.mxu0 0.0
      %1819 = vmatpush.msra.mxu0 0.0
      %1820 = vmatpush.msra.mxu0 0.0
      %1821 = vmatpush.msra.mxu0 0.0
      %1822 = vmatpush.msra.mxu0 0.0
      %1823 = vmatpush.msra.mxu0 0.0
      %1824 = vmatpush.msra.mxu0 %v1718
      %1825 = vmatpush.msra.mxu0 %v1716
      %1826 = vmatmul.f32.gmra.mxu0 %v1736
      %v1827 = vpop.f32.mrf.mxu0
      %v1828 = vadd.f32 %v1805, %v1827
      %1829 = vmatmul.f32.gmra.mxu0 %v1739
      %v1830 = vpop.f32.mrf.mxu0
      %v1831 = vadd.f32 %v1808, %v1830
      %1832 = vdwg.mxu0
      %v1833 = vadd.f32 %v1229, %v1782
      %v1834 = vadd.f32 %v1252, %v1828
      %v1835 = vadd.f32 %v1232, %v1785
      %v1836 = vadd.f32 %v1255, %v1831
      %1837 = vst [vmem:[%s430] sm:$0xff] %v1833
      %1838 = vst [vmem:[%s430 + $0x8] sm:$0xff] %v1834
      %1839 = vst [vmem:[%s430 + $0x10] sm:$0xff] %v1835
      %1840 = vst [vmem:[%s430 + $0x18] sm:$0xff] %v1836
      %p1841 = scmp.lt.s32.totalorder %s23, 1
      %s1842 = scalar_select %p1841, %s23, 1
      %s1843 = smul.addr %s1842, 4
      %s1844 = smul.addr %s1843, 8
      %s1845 = scalar_lea.vmem %s12, %s1844
      // Predicated region
      $region69: #{upsample_block_forward.1} parent=67 // pred_check
        %p1846 = pneg %p303
      $region70: #{upsample_block_forward.1} parent=67 // pred_check_branch
        %1848 = sbr.rel (%p1846) target = $region72
      $region71: #{upsample_block_forward.1} parent=67 // pred_region
        _
      $region72: #{upsample_block_forward.1} parent=67 // pred_fallthru
        _
    $region68: #{upsample_block_forward.1} parent=5 // pred_fallthru
      _
    %p1849 = scmp.le.s32.totalorder 2, %s18
    // Predicated region
    $region73: #{upsample_block_forward.1} parent=5 // pred_check
      %p1850 = pneg %p1849
    $region74: #{upsample_block_forward.1} parent=5 // pred_check_branch
      %1852 = sbr.rel (%p1850) target = $region76
    $region75: #{upsample_block_forward.1} parent=5 // pred_region
      %s1853 = ssub.s32 %s18, 2
      // Predicated region
      $region77: #{upsample_block_forward.1} parent=75 // pred_check
        %p1854 = pneg %p309
      $region78: #{upsample_block_forward.1} parent=75 // pred_check_branch
        %1856 = sbr.rel (%p1854) target = $region80
      $region79: #{upsample_block_forward.1} parent=75 // pred_region
        %p1857 = scmp.lt.s32.totalorder %s24, 1
        %s1858 = scalar_select %p1857, %s24, 1
        %s1859 = smul.addr %s1858, 4
        %s1860 = smul.addr %s1859, 8
        %s1861 = scalar_lea.vmem %s12, %s1860
      $region80: #{upsample_block_forward.1} parent=75 // pred_fallthru
        _
    $region76: #{upsample_block_forward.1} parent=5 // pred_fallthru
      _
  $region6: #{upsample_block_forward.1} parent=0 // loop_footer
    %s22 = sadd.s32 1, %s18
  $region7: #{upsample_block_forward.1} parent=0 // loop_footer_branch
    %17 = sbr.rel target = $region3
  $region8: #{upsample_block_forward.1} parent=0 // loop_exit
    _

</llo_original>
